<compile_context>
chip_gen: v6e
topology: v6e:2x2x1
jax: 0.10.0
libtpu: 0.0.40
codegen_flags: <defaults>
</compile_context>

<pallas_src>
import jax
import jax.numpy as jnp
from jax.experimental import pallas as pl
from jax.experimental.pallas import tpu as pltpu

NEG_SLOPE = 0.01  # nn.LeakyReLU default
LANE = 128        # TPU lane width


def _leaky_relu(x):
    return jnp.where(x >= 0, x, NEG_SLOPE * x)


def _round_up(n, m):
    return ((n + m - 1) // m) * m


def _make_kernel(n_enc_layers, n_dec_layers):
    """Kernel for one batch tile; weights/biases are VMEM-resident slabs."""

    def kernel(x_ref, w_ref, b_ref, o_ref):
        # x_ref: [TB, P] f32   w_ref: [L, P, P] bf16   b_ref: [L, 1, P] f32
        h = x_ref[...].astype(jnp.float32)

        def linear(h, li):
            w = w_ref[li]                         # [P, P], static index
            b = b_ref[li].astype(jnp.float32)     # [1, P]
            # bf16 into the MXU, f32 accumulate; bias add in f32 on the VPU.
            return jnp.dot(h.astype(w.dtype), w,
                           preferred_element_type=jnp.float32) + b

        # ---- encoder ----
        for li in range(n_enc_layers):
            if li > 0:
                h = _leaky_relu(h)
            h = linear(h, li)

        # Sigmoid appended to the encoder: exp + reciprocal both hit the EUP
        # slot instead of an iterative VALU divide.
        h = pl.reciprocal(1.0 + jnp.exp(-h), approx=True)

        # ---- decoder ----
        for li in range(n_dec_layers):
            if li > 0:
                h = _leaky_relu(h)
            h = linear(h, n_enc_layers + li)

        o_ref[...] = h.astype(o_ref.dtype)

    return kernel


def autoencoder_forward(x, enc_params, dec_params, *, param_dtype=jnp.bfloat16):
    """x: [B, D0]; *_params: lists of (W [in, out], b [1, out]) tuples."""
    n_enc, n_dec = len(enc_params), len(dec_params)
    all_params = enc_params + dec_params
    L = len(all_params)
    B, D0 = x.shape

    # One common padded feature width P (multiple of 128) for every layer so
    # the activation keeps a single lane-dense [TB, P] layout end-to-end and
    # all weights share the same padded tile shape (one contiguous slab).
    # TODO(synk): for models with very uneven layer widths, per-layer padded
    # widths would waste less MXU work than a single maximal P.
    P = max(_round_up(max(w.shape[0], w.shape[1]), LANE) for w, _ in all_params)

    w_slab = jnp.zeros((L, P, P), param_dtype)
    b_slab = jnp.zeros((L, 1, P), jnp.float32)
    for l, (w, b) in enumerate(all_params):
        w_slab = w_slab.at[l, : w.shape[0], : w.shape[1]].set(w.astype(param_dtype))
        b_slab = b_slab.at[l, :, : b.shape[1]].set(b.astype(jnp.float32))

    # Batch tile: multiple of 8, large where the batch allows it.
    if B >= 512:
        TB = 256
    elif B >= 128:
        TB = 128
    else:
        TB = _round_up(B, 8)
    B_pad = _round_up(B, TB)

    x_pad = jnp.zeros((B_pad, P), x.dtype).at[:B, :D0].set(x)

    kernel = _make_kernel(n_enc, n_dec)
    grid = (B_pad // TB,)

    out = pl.pallas_call(
        kernel,
        out_shape=jax.ShapeDtypeStruct((B_pad, P), x.dtype),
        grid_spec=pltpu.PrefetchScalarGridSpec(
            num_scalar_prefetch=0,
            grid=grid,
            in_specs=[
                # Activations: one batch tile per grid step (pipelined).
                pl.BlockSpec((TB, P), lambda i: (i, 0)),
                # Weight / bias slabs: constant block index -> DMA'd once,
                # resident in VMEM across all batch tiles.
                pl.BlockSpec((L, P, P), lambda i: (0, 0, 0)),
                pl.BlockSpec((L, 1, P), lambda i: (0, 0, 0)),
            ],
            out_specs=pl.BlockSpec((TB, P), lambda i: (i, 0)),
        ),
        compiler_params=pltpu.CompilerParams(
            # Batch tiles are independent -> shard across TCs on v7x.
            dimension_semantics=("parallel",),
            # Explicit VMEM budget (safe on v5e/v6e/v7x); if encoder_dims grow
            # past this, switch the weight slab to per-layer streaming.
            vmem_limit_bytes=32 * 1024 * 1024,
        ),
    )(x_pad, w_slab, b_slab)

    return out[:B, :D0]


def init_linear(key, n_in, n_out):
    """Deterministic init matching nn.Linear's uniform(-1/sqrt(fan_in), +...)."""
    kw, kb = jax.random.split(key)
    bound = 1.0 / jnp.sqrt(jnp.float32(n_in))
    # Stored as [in, out] so the kernel computes x @ W + b (== x @ W_pt.T + b).
    w = jax.random.uniform(kw, (n_in, n_out), jnp.float32, -bound, bound)
    b = jax.random.uniform(kb, (1, n_out), jnp.float32, -bound, bound)
    return w, b


def build_params(key, encoder_dims):
    enc_dims = list(encoder_dims)
    dec_dims = list(reversed(encoder_dims))
    enc_params, dec_params = [], []
    for i in range(len(enc_dims) - 1):
        key, sub = jax.random.split(key)
        enc_params.append(init_linear(sub, enc_dims[i], enc_dims[i + 1]))
    for i in range(len(dec_dims) - 1):
        key, sub = jax.random.split(key)
        dec_params.append(init_linear(sub, dec_dims[i], dec_dims[i + 1]))
    return enc_params, dec_params


def reference_forward(x, enc_params, dec_params, *, param_dtype=jnp.bfloat16):
    """Pure-JAX reference mimicking the kernel's bf16-in / f32-accumulate dots."""

    def linear(h, w, b):
        h_q = h.astype(param_dtype).astype(jnp.float32)
        w_q = w.astype(param_dtype).astype(jnp.float32)
        return h_q @ w_q + b

    h = x.astype(jnp.float32)
    for i, (w, b) in enumerate(enc_params):
        if i > 0:
            h = _leaky_relu(h)
        h = linear(h, w, b)
    h = jax.nn.sigmoid(h)
    for i, (w, b) in enumerate(dec_params):
        if i > 0:
            h = _leaky_relu(h)
        h = linear(h, w, b)
    return h


if __name__ == "__main__":
    key = jax.random.PRNGKey(0)
    encoder_dims = [32, 16, 8]   # D0 -> ... -> bottleneck
    batch = 512                  # two 256-row batch tiles -> pipelined grid

    key, kx, kp = jax.random.split(key, 3)
    x = jax.random.normal(kx, (batch, encoder_dims[0]), jnp.float32)
    enc_params, dec_params = build_params(kp, encoder_dims)

    out = autoencoder_forward(x, enc_params, dec_params)
    out = jax.block_until_ready(out)

    ref = reference_forward(x, enc_params, dec_params)
    assert out.shape == (batch, encoder_dims[0])
    # bf16 matmul inputs + approx reciprocal in the sigmoid -> loose tolerance.
    assert jnp.allclose(out, ref, atol=1e-2, rtol=1e-2), float(
        jnp.max(jnp.abs(out - ref)))

    print("KERNEL_OK")
</pallas_src>

<mosaic_0001>
module attributes {stable_mosaic.version = 11 : i64} {
  func.func @kernel(%arg0: i32, %arg1: memref<256x128xf32, #tpu.memory_space<vmem>>, %arg2: memref<4x128x128xbf16, #tpu.memory_space<vmem>>, %arg3: memref<4x1x128xf32, #tpu.memory_space<vmem>>, %arg4: memref<256x128xf32, #tpu.memory_space<vmem>>) attributes {dimension_semantics = [#tpu.dimension_semantics<parallel>], iteration_bounds = array<i64: 2>, scalar_prefetch = 0 : i64, scratch_operands = 0 : i64, tpu.core_type = #tpu.core_type<tc>, window_params = [{transform_indices = @transform_0, window_bounds = array<i64: 256, 128>}, {pipeline_mode = #tpu.pipeline_mode<synchronous>, transform_indices = @transform_1, window_bounds = array<i64: 4, 128, 128>}, {pipeline_mode = #tpu.pipeline_mode<synchronous>, transform_indices = @transform_2, window_bounds = array<i64: 4, 1, 128>}, {transform_indices = @transform_3, window_bounds = array<i64: 256, 128>}]} {
    %c0 = arith.constant 0 : index
    %c0_0 = arith.constant 0 : index
    %0 = vector.load %arg1[%c0, %c0_0] : memref<256x128xf32, #tpu.memory_space<vmem>>, vector<256x128xf32>
    %c0_1 = arith.constant 0 : index
    %c0_2 = arith.constant 0 : index
    %c0_3 = arith.constant 0 : index
    %1 = vector.load %arg2[%c0_1, %c0_2, %c0_3] : memref<4x128x128xbf16, #tpu.memory_space<vmem>>, vector<1x128x128xbf16>
    %2 = vector.shape_cast %1 : vector<1x128x128xbf16> to vector<128x128xbf16>
    %c0_4 = arith.constant 0 : index
    %c0_5 = arith.constant 0 : index
    %c0_6 = arith.constant 0 : index
    %3 = vector.load %arg3[%c0_4, %c0_5, %c0_6] : memref<4x1x128xf32, #tpu.memory_space<vmem>>, vector<1x1x128xf32>
    %4 = vector.shape_cast %3 : vector<1x1x128xf32> to vector<1x128xf32>
    %5 = arith.truncf %0 : vector<256x128xf32> to vector<256x128xbf16>
    %cst = arith.constant dense<0.000000e+00> : vector<256x128xf32>
    %6 = tpu.matmul %5, %2, %cst {dimension_numbers = #tpu.dot_dimension_numbers<[1], [0], [0], [1], [0, 0, 1, 1], [], []>} : vector<256x128xbf16>, vector<128x128xbf16>, vector<256x128xf32> -> vector<256x128xf32>
    %7 = vector.broadcast %4 : vector<1x128xf32> to vector<256x128xf32>
    %8 = arith.addf %6, %7 : vector<256x128xf32>
    %cst_7 = arith.constant 0.000000e+00 : f32
    %9 = vector.broadcast %cst_7 : f32 to vector<256x128xf32>
    %10 = arith.cmpf oge, %8, %9 : vector<256x128xf32>
    %cst_8 = arith.constant 0.00999999977 : f32
    %11 = vector.broadcast %cst_8 : f32 to vector<256x128xf32>
    %12 = arith.mulf %11, %8 : vector<256x128xf32>
    %13 = arith.select %10, %8, %12 : vector<256x128xi1>, vector<256x128xf32>
    %c1 = arith.constant 1 : index
    %c0_9 = arith.constant 0 : index
    %c0_10 = arith.constant 0 : index
    %14 = vector.load %arg2[%c1, %c0_9, %c0_10] : memref<4x128x128xbf16, #tpu.memory_space<vmem>>, vector<1x128x128xbf16>
    %15 = vector.shape_cast %14 : vector<1x128x128xbf16> to vector<128x128xbf16>
    %c1_11 = arith.constant 1 : index
    %c0_12 = arith.constant 0 : index
    %c0_13 = arith.constant 0 : index
    %16 = vector.load %arg3[%c1_11, %c0_12, %c0_13] : memref<4x1x128xf32, #tpu.memory_space<vmem>>, vector<1x1x128xf32>
    %17 = vector.shape_cast %16 : vector<1x1x128xf32> to vector<1x128xf32>
    %18 = arith.truncf %13 : vector<256x128xf32> to vector<256x128xbf16>
    %cst_14 = arith.constant dense<0.000000e+00> : vector<256x128xf32>
    %19 = tpu.matmul %18, %15, %cst_14 {dimension_numbers = #tpu.dot_dimension_numbers<[1], [0], [0], [1], [0, 0, 1, 1], [], []>} : vector<256x128xbf16>, vector<128x128xbf16>, vector<256x128xf32> -> vector<256x128xf32>
    %20 = vector.broadcast %17 : vector<1x128xf32> to vector<256x128xf32>
    %21 = arith.addf %19, %20 : vector<256x128xf32>
    %cst_15 = arith.constant 0.000000e+00 : f32
    %22 = vector.broadcast %cst_15 : f32 to vector<256x128xf32>
    %23 = arith.subf %22, %21 : vector<256x128xf32>
    %24 = math.exp %23 : vector<256x128xf32>
    %cst_16 = arith.constant 1.000000e+00 : f32
    %25 = vector.broadcast %cst_16 : f32 to vector<256x128xf32>
    %26 = arith.addf %25, %24 : vector<256x128xf32>
    %27 = tpu.reciprocal %26 {approx = true} : vector<256x128xf32> -> vector<256x128xf32>
    %c2 = arith.constant 2 : index
    %c0_17 = arith.constant 0 : index
    %c0_18 = arith.constant 0 : index
    %28 = vector.load %arg2[%c2, %c0_17, %c0_18] : memref<4x128x128xbf16, #tpu.memory_space<vmem>>, vector<1x128x128xbf16>
    %29 = vector.shape_cast %28 : vector<1x128x128xbf16> to vector<128x128xbf16>
    %c2_19 = arith.constant 2 : index
    %c0_20 = arith.constant 0 : index
    %c0_21 = arith.constant 0 : index
    %30 = vector.load %arg3[%c2_19, %c0_20, %c0_21] : memref<4x1x128xf32, #tpu.memory_space<vmem>>, vector<1x1x128xf32>
    %31 = vector.shape_cast %30 : vector<1x1x128xf32> to vector<1x128xf32>
    %32 = arith.truncf %27 : vector<256x128xf32> to vector<256x128xbf16>
    %cst_22 = arith.constant dense<0.000000e+00> : vector<256x128xf32>
    %33 = tpu.matmul %32, %29, %cst_22 {dimension_numbers = #tpu.dot_dimension_numbers<[1], [0], [0], [1], [0, 0, 1, 1], [], []>} : vector<256x128xbf16>, vector<128x128xbf16>, vector<256x128xf32> -> vector<256x128xf32>
    %34 = vector.broadcast %31 : vector<1x128xf32> to vector<256x128xf32>
    %35 = arith.addf %33, %34 : vector<256x128xf32>
    %cst_23 = arith.constant 0.000000e+00 : f32
    %36 = vector.broadcast %cst_23 : f32 to vector<256x128xf32>
    %37 = arith.cmpf oge, %35, %36 : vector<256x128xf32>
    %cst_24 = arith.constant 0.00999999977 : f32
    %38 = vector.broadcast %cst_24 : f32 to vector<256x128xf32>
    %39 = arith.mulf %38, %35 : vector<256x128xf32>
    %40 = arith.select %37, %35, %39 : vector<256x128xi1>, vector<256x128xf32>
    %c3 = arith.constant 3 : index
    %c0_25 = arith.constant 0 : index
    %c0_26 = arith.constant 0 : index
    %41 = vector.load %arg2[%c3, %c0_25, %c0_26] : memref<4x128x128xbf16, #tpu.memory_space<vmem>>, vector<1x128x128xbf16>
    %42 = vector.shape_cast %41 : vector<1x128x128xbf16> to vector<128x128xbf16>
    %c3_27 = arith.constant 3 : index
    %c0_28 = arith.constant 0 : index
    %c0_29 = arith.constant 0 : index
    %43 = vector.load %arg3[%c3_27, %c0_28, %c0_29] : memref<4x1x128xf32, #tpu.memory_space<vmem>>, vector<1x1x128xf32>
    %44 = vector.shape_cast %43 : vector<1x1x128xf32> to vector<1x128xf32>
    %45 = arith.truncf %40 : vector<256x128xf32> to vector<256x128xbf16>
    %cst_30 = arith.constant dense<0.000000e+00> : vector<256x128xf32>
    %46 = tpu.matmul %45, %42, %cst_30 {dimension_numbers = #tpu.dot_dimension_numbers<[1], [0], [0], [1], [0, 0, 1, 1], [], []>} : vector<256x128xbf16>, vector<128x128xbf16>, vector<256x128xf32> -> vector<256x128xf32>
    %47 = vector.broadcast %44 : vector<1x128xf32> to vector<256x128xf32>
    %48 = arith.addf %46, %47 : vector<256x128xf32>
    %c0_31 = arith.constant 0 : index
    %c0_32 = arith.constant 0 : index
    %49 = vector.load %arg4[%c0_31, %c0_32] : memref<256x128xf32, #tpu.memory_space<vmem>>, vector<256x128xf32>
    tpu.vector_store %arg4[%c0_31, %c0_32], %48 {strides = array<i32>} : memref<256x128xf32, #tpu.memory_space<vmem>>, vector<256x128xf32>,
    return
  }
  func.func @transform_0(%arg0: i32) -> (i32, i32) {
    %c0_i32 = arith.constant 0 : i32
    %c0_i32_0 = arith.constant 0 : i32
    return %arg0, %c0_i32 : i32, i32
  }
  func.func @transform_1(%arg0: i32) -> (i32, i32, i32) {
    %c0_i32 = arith.constant 0 : i32
    %c0_i32_0 = arith.constant 0 : i32
    %c0_i32_1 = arith.constant 0 : i32
    %c0_i32_2 = arith.constant 0 : i32
    return %c0_i32, %c0_i32_0, %c0_i32_1 : i32, i32, i32
  }
  func.func @transform_2(%arg0: i32) -> (i32, i32, i32) {
    %c0_i32 = arith.constant 0 : i32
    %c0_i32_0 = arith.constant 0 : i32
    %c0_i32_1 = arith.constant 0 : i32
    %c0_i32_2 = arith.constant 0 : i32
    return %c0_i32, %c0_i32_0, %c0_i32_1 : i32, i32, i32
  }
  func.func @transform_3(%arg0: i32) -> (i32, i32) {
    %c0_i32 = arith.constant 0 : i32
    %c0_i32_0 = arith.constant 0 : i32
    return %arg0, %c0_i32 : i32, i32
  }
}

</mosaic_0001>

<llo_original>
// kernel: tpu_custom_call.1
$region0: #{tpu_custom_call.1}
  #allocation0 [shape = 'u32[]', space=smem, size = 0x4, offset = 0x4, fixed_abs, tag = 'smem constant byte address 0x4 - core index']
  #allocation1 [shape = 'u32[144,128]{1,0:T(1,128)}', space=vmem, size = 0x12000, scoped, tag = 'internal scratch']
  %s0 = inlined_call_operand.hbm [shape: f32[512,128], index: 0, kind: input, shape index: {}]
  %s1 = inlined_call_operand.hbm [shape: bf16[4,128,128], index: 1, kind: input, shape index: {}]
  %s2 = inlined_call_operand.hbm [shape: f32[4,1,128], index: 2, kind: input, shape index: {}]
  %s3 = inlined_call_operand.hbm [shape: f32[512,128], index: 3, kind: output, shape index: {}]
  %s4 = sld [smem:[#allocation0]]
  $region57: #{tpu_custom_call.1} parent=0
    _
  %s6 = ssub.s32 1, %s4
  %s7 = scalar_select 0, %s6, %s4
  $region1: #{tpu_custom_call.1} parent=0
    #allocation2 [shape = 'u8[262144]{0}', space=vmem, size = 0x40000, scoped, tag = 'input window, operand 0']
    #allocation3 [shape = 's32[2]{0}', space=sflag, size = 0x8, scoped, tag = 'scoped memory for tpu_custom_call.1']
    #allocation4 [shape = 's32[2]{0}', space=sflag, size = 0x8, scoped, tag = 'scoped memory for tpu_custom_call.1']
    #allocation5 [shape = 'u8[131072]{0}', space=vmem, size = 0x20000, scoped, tag = 'input window, operand 1, single buffered']
    #allocation6 [shape = 's32[1]{0}', space=sflag, size = 0x4, scoped, tag = 'scoped memory for tpu_custom_call.1']
    #allocation7 [shape = 'u8[2048]{0}', space=vmem, size = 0x800, scoped, tag = 'input window, operand 2, single buffered']
    #allocation8 [shape = 'u8[262144]{0}', space=vmem, size = 0x40000, scoped, tag = 'output window, operand 0']
    %8 = vsyncpa [#allocation3], 0
    %s9 = scalar_lea.sflag [#allocation3], 1
    %10 = vsyncpa %s9, 0
    %11 = vsyncpa [#allocation6], 0
    %12 = vsyncpa [#allocation4], 0
    %s13 = scalar_lea.sflag [#allocation4], 1
    %14 = vsyncpa %s13, 0
    loop: start=0, step=1, limit=4
    $region2: #{tpu_custom_call.1} parent=1 // loop_pre_header
      _
    $region3: #{tpu_custom_call.1} parent=1 // loop_header
      %s16 = sphi 0, %s20
      %p17 = scmp.ge.s32.totalorder %s16, 4
      %s26 = sphi 0, %s28
      %s29 = sphi 0, %s26
      %s30 = sphi 0, %s29
      %s46 = sphi 0, %s30
      %s50 = sphi 0, %s50
      %s52 = sphi 0, %s50
      %s53 = sphi 0, %s52
      %s67 = sphi 0, %s53
      %s71 = sphi 0, %s71
      %s73 = sphi 0, %s71
      %s74 = sphi 0, %s73
      %s88 = sphi 0, %s74
      %s94 = sphi 0, %s96
      %s97 = sphi 0, %s94
      %s98 = sphi 0, %s97
      %s114 = sphi 0, %s98
    $region4: #{tpu_custom_call.1} parent=1 // loop_header_branch
      %19 = sbr.rel (%p17) target = $region8
    $region5: #{tpu_custom_call.1} parent=1 // loop_body
      %s21 = ssub.s32 %s16, 1
      %s22 = ssub.s32 %s16, 2
      %s23 = sadd.s32 %s16, 1
      %s24 = ssub.s32 %s16, %s23
      %p25 = scmp.eq.s32.totalorder %s24, 0
      %s27 = sadd.s32 %s26, 1
      %s28 = scalar_select %p25, %s26, %s27
      %p31 = pneg %p25
      %p32 = scmp.eq.s32.totalorder %s16, 1
      %p33 = por %p31, %p32
      %p34 = scmp.ne.s32.totalorder %s26, %s29
      %p35 = scmp.eq.s32.totalorder %s16, 0
      %p36 = por %p34, %p35
      %p37 = scmp.ne.s32.totalorder %s26, %s29
      %p38 = scmp.eq.s32.totalorder %s21, 1
      %p39 = por %p37, %p38
      %p40 = scmp.ne.s32.totalorder %s29, %s30
      %p41 = scmp.eq.s32.totalorder %s21, 0
      %p42 = por %p40, %p41
      %p43 = scmp.ne.s32.totalorder %s29, %s30
      %p44 = scmp.eq.s32.totalorder %s22, 1
      %p45 = por %p43, %p44
      %p47 = scmp.ne.s32.totalorder %s30, %s46
      %p48 = scmp.eq.s32.totalorder %s22, 0
      %p49 = por %p47, %p48
      %s51 = sadd.s32 %s50, 1
      %p54 = scmp.eq.s32.totalorder %s16, 1
      %p55 = scmp.ne.s32.totalorder %s50, %s52
      %p56 = scmp.eq.s32.totalorder %s16, 0
      %p57 = por %p55, %p56
      %p58 = scmp.ne.s32.totalorder %s50, %s52
      %p59 = scmp.eq.s32.totalorder %s21, 1
      %p60 = por %p58, %p59
      %p61 = scmp.ne.s32.totalorder %s52, %s53
      %p62 = scmp.eq.s32.totalorder %s21, 0
      %p63 = por %p61, %p62
      %p64 = scmp.ne.s32.totalorder %s52, %s53
      %p65 = scmp.eq.s32.totalorder %s22, 1
      %p66 = por %p64, %p65
      %p68 = scmp.ne.s32.totalorder %s53, %s67
      %p69 = scmp.eq.s32.totalorder %s22, 0
      %p70 = por %p68, %p69
      %s72 = sadd.s32 %s71, 1
      %p75 = scmp.eq.s32.totalorder %s16, 1
      %p76 = scmp.ne.s32.totalorder %s71, %s73
      %p77 = scmp.eq.s32.totalorder %s16, 0
      %p78 = por %p76, %p77
      %p79 = scmp.ne.s32.totalorder %s71, %s73
      %p80 = scmp.eq.s32.totalorder %s21, 1
      %p81 = por %p79, %p80
      %p82 = scmp.ne.s32.totalorder %s73, %s74
      %p83 = scmp.eq.s32.totalorder %s21, 0
      %p84 = por %p82, %p83
      %p85 = scmp.ne.s32.totalorder %s73, %s74
      %p86 = scmp.eq.s32.totalorder %s22, 1
      %p87 = por %p85, %p86
      %p89 = scmp.ne.s32.totalorder %s74, %s88
      %p90 = scmp.eq.s32.totalorder %s22, 0
      %p91 = por %p89, %p90
      %s92 = ssub.s32 %s16, %s23
      %p93 = scmp.eq.s32.totalorder %s92, 0
      %s95 = sadd.s32 %s94, 1
      %s96 = scalar_select %p93, %s94, %s95
      %p99 = pneg %p93
      %p100 = scmp.eq.s32.totalorder %s16, 1
      %p101 = por %p99, %p100
      %p102 = scmp.ne.s32.totalorder %s94, %s97
      %p103 = scmp.eq.s32.totalorder %s16, 0
      %p104 = por %p102, %p103
      %p105 = scmp.ne.s32.totalorder %s94, %s97
      %p106 = scmp.eq.s32.totalorder %s21, 1
      %p107 = por %p105, %p106
      %p108 = scmp.ne.s32.totalorder %s97, %s98
      %p109 = scmp.eq.s32.totalorder %s21, 0
      %p110 = por %p108, %p109
      %p111 = scmp.ne.s32.totalorder %s97, %s98
      %p112 = scmp.eq.s32.totalorder %s22, 1
      %p113 = por %p111, %p112
      %p115 = scmp.ne.s32.totalorder %s98, %s114
      %p116 = scmp.eq.s32.totalorder %s22, 0
      %p117 = por %p115, %p116
      %p118 = scmp.le.s32.totalorder 1, %s16
      %p119 = scmp.lt.s32.totalorder %s16, 3
      %p120 = pnand %p118, %p119
      %p121 = pneg %p120
      // Predicated region
      $region9: #{tpu_custom_call.1} parent=5 // pred_check
        _
      $region10: #{tpu_custom_call.1} parent=5 // pred_check_branch
        %123 = sbr.rel (%p120) target = $region12
      $region11: #{tpu_custom_call.1} parent=5 // pred_region
        %s124 = ssub.s32 %s16, 1
        // Predicated region
        $region13: #{tpu_custom_call.1} parent=11 // pred_check
          %p125 = pneg %p63
        $region14: #{tpu_custom_call.1} parent=11 // pred_check_branch
          %127 = sbr.rel (%p125) target = $region16
        $region15: #{tpu_custom_call.1} parent=11 // pred_region
          %s129 = ssub.s32 4096, 4096
          %130 = vsyncadd [#allocation6], %s129
          %s131 = sshll.u32 [#allocation5], 4
          %s132 = int_to_ptr.vmem [resolvable:$true] %s131
          %137 = dma.hbm_to_vmem [thread:$0]  %s1, 4096, %s132, [#allocation6], 64, 64, 4
        $region16: #{tpu_custom_call.1} parent=11 // pred_fallthru
          _
        // Predicated region
        $region17: #{tpu_custom_call.1} parent=11 // pred_check
          %p138 = pneg %p84
        $region18: #{tpu_custom_call.1} parent=11 // pred_check_branch
          %140 = sbr.rel (%p138) target = $region20
        $region19: #{tpu_custom_call.1} parent=11 // pred_region
          %s142 = ssub.s32 64, 64
          %143 = vsyncadd [#allocation6], %s142
          %s144 = sshll.u32 [#allocation7], 4
          %s145 = int_to_ptr.vmem [resolvable:$true] %s144
          %150 = dma.hbm_to_vmem [thread:$0]  %s2, 64, %s145, [#allocation6], 16, 16, 1
        $region20: #{tpu_custom_call.1} parent=11 // pred_fallthru
          _
      $region12: #{tpu_custom_call.1} parent=5 // pred_fallthru
        _
      %p151 = scmp.lt.s32.totalorder %s16, 2
      // Predicated region
      $region21: #{tpu_custom_call.1} parent=5 // pred_check
        %p152 = pneg %p151
      $region22: #{tpu_custom_call.1} parent=5 // pred_check_branch
        %154 = sbr.rel (%p152) target = $region24
      $region23: #{tpu_custom_call.1} parent=5 // pred_region
        // Predicated region
        $region25: #{tpu_custom_call.1} parent=23 // pred_check
          %p155 = pneg %p36
        $region26: #{tpu_custom_call.1} parent=23 // pred_check_branch
          %157 = sbr.rel (%p155) target = $region28
        $region27: #{tpu_custom_call.1} parent=23 // pred_region
          %s158 = sand.u32 %s26, 1
          %s159 = scalar_lea.sflag [#allocation3], %s158
          %s160 = sand.u32 %s26, 1
          %s161 = smul.addr %s160, 256
          %s162 = scalar_lea.vmem [#allocation2], %s161
          %s163 = smul.u32 32, %s16
          %s165 = ssub.s32 4096, 4096
          %166 = vsyncadd %s159, %s165
          %s167 = smul.addr %s163, 128
          %s168 = scalar_lea.hbm %s0, %s167
          %s169 = sshll.u32 %s162, 4
          %s170 = int_to_ptr.vmem [resolvable:$true] %s169
          %175 = dma.hbm_to_vmem [thread:$0]  %s168, 4096, %s170, %s159, 128, 128, 8
        $region28: #{tpu_custom_call.1} parent=23 // pred_fallthru
          _
      $region24: #{tpu_custom_call.1} parent=5 // pred_fallthru
        _
      %p176 = scmp.le.s32.totalorder 1, %s16
      %p177 = scmp.lt.s32.totalorder %s16, 3
      %p178 = pnand %p176, %p177
      %p179 = pneg %p178
      // Predicated region
      $region29: #{tpu_custom_call.1} parent=5 // pred_check
        _
      $region30: #{tpu_custom_call.1} parent=5 // pred_check_branch
        %181 = sbr.rel (%p178) target = $region32
      $region31: #{tpu_custom_call.1} parent=5 // pred_region
        %s182 = ssub.s32 %s16, 1
        %s183 = sand.u32 %s29, 1
        %s184 = scalar_lea.sflag [#allocation3], %s183
        %s185 = sand.u32 %s29, 1
        %s186 = smul.addr %s185, 256
        %s187 = scalar_lea.vmem [#allocation2], %s186
        // Predicated region
        $region33: #{tpu_custom_call.1} parent=31 // pred_check
          %p188 = pneg %p42
        $region34: #{tpu_custom_call.1} parent=31 // pred_check_branch
          %190 = sbr.rel (%p188) target = $region36
        $region35: #{tpu_custom_call.1} parent=31 // pred_region
          %191 = dma.done %s184, 4096
        $region36: #{tpu_custom_call.1} parent=31 // pred_fallthru
          _
        // Predicated region
        $region37: #{tpu_custom_call.1} parent=31 // pred_check
          %p192 = pneg %p63
        $region38: #{tpu_custom_call.1} parent=31 // pred_check_branch
          %194 = sbr.rel (%p192) target = $region40
        $region39: #{tpu_custom_call.1} parent=31 // pred_region
          %195 = dma.done [#allocation6], 4096
        $region40: #{tpu_custom_call.1} parent=31 // pred_fallthru
          _
        // Predicated region
        $region41: #{tpu_custom_call.1} parent=31 // pred_check
          %p196 = pneg %p84
        $region42: #{tpu_custom_call.1} parent=31 // pred_check_branch
          %198 = sbr.rel (%p196) target = $region44
        $region43: #{tpu_custom_call.1} parent=31 // pred_region
          %199 = dma.done [#allocation6], 64
        $region44: #{tpu_custom_call.1} parent=31 // pred_fallthru
          _
        %s200 = sand.u32 %s29, 1
        %s201 = scalar_lea.sflag [#allocation3], %s200
        %s202 = sand.u32 %s29, 1
        %s203 = smul.addr %s202, 256
        %s204 = scalar_lea.vmem [#allocation2], %s203
        %p205 = pneg %p42
        %p206 = pneg %p39
        %p207 = pneg %p63
        %p208 = pneg %p60
        %p209 = pneg %p84
        %p210 = pneg %p81
        %p211 = pneg %p110
        %p212 = pneg %p107
        %s213 = sand.u32 %s97, 1
        %s214 = scalar_lea.sflag [#allocation4], %s213
        %s215 = sand.u32 %s97, 1
        %s216 = smul.addr %s215, 256
        %s217 = scalar_lea.vmem [#allocation8], %s216
        %s218 = smul.u32 32, %s21
        %s219 = smul.u32 32, %s21
        %v221 = vld [vmem:[%s187] sm:$0xff]
        %v222 = vld [vmem:[%s187 + $0x8] sm:$0xff]
        %v223 = vld [vmem:[%s187 + $0x10] sm:$0xff]
        %v224 = vld [vmem:[%s187 + $0x18] sm:$0xff]
        %v225 = vld [vmem:[%s187 + $0x20] sm:$0xff]
        %v226 = vld [vmem:[%s187 + $0x28] sm:$0xff]
        %v227 = vld [vmem:[%s187 + $0x30] sm:$0xff]
        %v228 = vld [vmem:[%s187 + $0x38] sm:$0xff]
        %v229 = vld [vmem:[%s187 + $0x40] sm:$0xff]
        %v230 = vld [vmem:[%s187 + $0x48] sm:$0xff]
        %v231 = vld [vmem:[%s187 + $0x50] sm:$0xff]
        %v232 = vld [vmem:[%s187 + $0x58] sm:$0xff]
        %v233 = vld [vmem:[%s187 + $0x60] sm:$0xff]
        %v234 = vld [vmem:[%s187 + $0x68] sm:$0xff]
        %v235 = vld [vmem:[%s187 + $0x70] sm:$0xff]
        %v236 = vld [vmem:[%s187 + $0x78] sm:$0xff]
        %v237 = vld [vmem:[%s187 + $0x80] sm:$0xff]
        %v238 = vld [vmem:[%s187 + $0x88] sm:$0xff]
        %v239 = vld [vmem:[%s187 + $0x90] sm:$0xff]
        %v240 = vld [vmem:[%s187 + $0x98] sm:$0xff]
        %v241 = vld [vmem:[%s187 + $0xa0] sm:$0xff]
        %v242 = vld [vmem:[%s187 + $0xa8] sm:$0xff]
        %v243 = vld [vmem:[%s187 + $0xb0] sm:$0xff]
        %v244 = vld [vmem:[%s187 + $0xb8] sm:$0xff]
        %v245 = vld [vmem:[%s187 + $0xc0] sm:$0xff]
        %v246 = vld [vmem:[%s187 + $0xc8] sm:$0xff]
        %v247 = vld [vmem:[%s187 + $0xd0] sm:$0xff]
        %v248 = vld [vmem:[%s187 + $0xd8] sm:$0xff]
        %v249 = vld [vmem:[%s187 + $0xe0] sm:$0xff]
        %v250 = vld [vmem:[%s187 + $0xe8] sm:$0xff]
        %v251 = vld [vmem:[%s187 + $0xf0] sm:$0xff]
        %v252 = vld [vmem:[%s187 + $0xf8] sm:$0xff]
        %v253 = vld [vmem:[#allocation5] sm:$0xf]
        %v254 = vld [vmem:[#allocation5 + $0x4] sm:$0xf]
        %v255 = vld [vmem:[#allocation5 + $0x8] sm:$0xf]
        %v256 = vld [vmem:[#allocation5 + $0xc] sm:$0xf]
        %v257 = vld [vmem:[#allocation5 + $0x10] sm:$0xf]
        %v258 = vld [vmem:[#allocation5 + $0x14] sm:$0xf]
        %v259 = vld [vmem:[#allocation5 + $0x18] sm:$0xf]
        %v260 = vld [vmem:[#allocation5 + $0x1c] sm:$0xf]
        %v261 = vld [vmem:[#allocation5 + $0x20] sm:$0xf]
        %v262 = vld [vmem:[#allocation5 + $0x24] sm:$0xf]
        %v263 = vld [vmem:[#allocation5 + $0x28] sm:$0xf]
        %v264 = vld [vmem:[#allocation5 + $0x2c] sm:$0xf]
        %v265 = vld [vmem:[#allocation5 + $0x30] sm:$0xf]
        %v266 = vld [vmem:[#allocation5 + $0x34] sm:$0xf]
        %v267 = vld [vmem:[#allocation5 + $0x38] sm:$0xf]
        %v268 = vld [vmem:[#allocation5 + $0x3c] sm:$0xf]
        %v269 = vld [vmem:[#allocation7] sm:$0x1]
        %v270 = vpack.c.bf16 %v222, %v221
        %v271 = vpack.c.bf16 %v224, %v223
        %v272 = vpack.c.bf16 %v226, %v225
        %v273 = vpack.c.bf16 %v228, %v227
        %v274 = vpack.c.bf16 %v230, %v229
        %v275 = vpack.c.bf16 %v232, %v231
        %v276 = vpack.c.bf16 %v234, %v233
        %v277 = vpack.c.bf16 %v236, %v235
        %v278 = vpack.c.bf16 %v238, %v237
        %v279 = vpack.c.bf16 %v240, %v239
        %v280 = vpack.c.bf16 %v242, %v241
        %v281 = vpack.c.bf16 %v244, %v243
        %v282 = vpack.c.bf16 %v246, %v245
        %v283 = vpack.c.bf16 %v248, %v247
        %v284 = vpack.c.bf16 %v250, %v249
        %v285 = vpack.c.bf16 %v252, %v251
        %v287 = vlaneseq
        %v288 = vshrl.u32 %v287, 7
        %v289 = vsub.s32 0, %v288
        %v290 = vrot.slane %v269, %v289
        %v308 = vunpack.c.l.b16 %v253
        %v309 = vunpack.c.l.b16 %v254
        %v310 = vunpack.c.l.b16 %v255
        %v311 = vunpack.c.l.b16 %v256
        %v312 = vunpack.c.l.b16 %v257
        %v313 = vunpack.c.l.b16 %v258
        %v314 = vunpack.c.l.b16 %v259
        %v315 = vunpack.c.l.b16 %v260
        %v316 = vunpack.c.l.b16 %v261
        %v317 = vunpack.c.l.b16 %v262
        %v318 = vunpack.c.l.b16 %v263
        %v319 = vunpack.c.l.b16 %v264
        %v320 = vunpack.c.l.b16 %v265
        %v321 = vunpack.c.l.b16 %v266
        %v322 = vunpack.c.l.b16 %v267
        %v323 = vunpack.c.l.b16 %v268
        %v324 = vpack.c.b16 %v309, %v308
        %v325 = vpack.c.b16 %v311, %v310
        %v326 = vpack.c.b16 %v313, %v312
        %v327 = vpack.c.b16 %v315, %v314
        %v328 = vpack.c.b16 %v317, %v316
        %v329 = vpack.c.b16 %v319, %v318
        %v330 = vpack.c.b16 %v321, %v320
        %v331 = vpack.c.b16 %v323, %v322
        %340 = vmatprep.subr.bf16.mxu0 0
        %341 = vmatpush1.bf16.msra.mxu0 %v331
        %342 = vmatprep.subr.bf16.mxu0 0
        %343 = vmatpush1.bf16.msra.mxu0 %v330
        %344 = vmatprep.subr.bf16.mxu0 0
        %345 = vmatpush1.bf16.msra.mxu0 %v329
        %346 = vmatprep.subr.bf16.mxu0 0
        %347 = vmatpush1.bf16.msra.mxu0 %v328
        %348 = vmatprep.subr.bf16.mxu0 0
        %349 = vmatpush1.bf16.msra.mxu0 %v327
        %350 = vmatprep.subr.bf16.mxu0 0
        %351 = vmatpush1.bf16.msra.mxu0 %v326
        %352 = vmatprep.subr.bf16.mxu0 0
        %353 = vmatpush1.bf16.msra.mxu0 %v325
        %354 = vmatprep.subr.bf16.mxu0 0
        %355 = vmatpush1.bf16.msra.mxu0 %v324
        %356 = vmatprep.subr.bf16.mxu0 0
        %357 = vmatpush2.bf16.msra.mxu0 0
        %358 = vmatprep.subr.bf16.mxu0 0
        %359 = vmatpush2.bf16.msra.mxu0 0
        %360 = vmatprep.subr.bf16.mxu0 0
        %361 = vmatpush2.bf16.msra.mxu0 0
        %362 = vmatprep.subr.bf16.mxu0 0
        %363 = vmatpush2.bf16.msra.mxu0 0
        %364 = vmatprep.subr.bf16.mxu0 0
        %365 = vmatpush2.bf16.msra.mxu0 0
        %366 = vmatprep.subr.bf16.mxu0 0
        %367 = vmatpush2.bf16.msra.mxu0 0
        %368 = vmatprep.subr.bf16.mxu0 0
        %369 = vmatpush2.bf16.msra.mxu0 0
        %370 = vmatprep.subr.bf16.mxu0 0
        %371 = vmatpush2.bf16.msra.mxu0 0
        %372 = vmatprep.mubr.bf16.mxu0 0
        %373 = vmatmul.mubr.bf16.gmra.mxu0 %v270
        %v374 = vpop.f32.mrf.mxu0
        %v375 = vadd.f32 %v290, %v374
        %v376 = vpop.f32.mrf.mxu0
        %v377 = vpop.f32.mrf.mxu0
        %v378 = vadd.f32 %v290, %v377
        %v379 = vpop.f32.mrf.mxu0
        %380 = vmatprep.mubr.bf16.mxu0 0
        %381 = vmatmul.mubr.bf16.gmra.mxu0 %v271
        %v382 = vpop.f32.mrf.mxu0
        %v383 = vadd.f32 %v290, %v382
        %v384 = vpop.f32.mrf.mxu0
        %v385 = vpop.f32.mrf.mxu0
        %v386 = vadd.f32 %v290, %v385
        %v387 = vpop.f32.mrf.mxu0
        %388 = vmatprep.mubr.bf16.mxu0 0
        %389 = vmatmul.mubr.bf16.gmra.mxu0 %v272
        %v390 = vpop.f32.mrf.mxu0
        %v391 = vadd.f32 %v290, %v390
        %v392 = vpop.f32.mrf.mxu0
        %v393 = vpop.f32.mrf.mxu0
        %v394 = vadd.f32 %v290, %v393
        %v395 = vpop.f32.mrf.mxu0
        %396 = vmatprep.mubr.bf16.mxu0 0
        %397 = vmatmul.mubr.bf16.gmra.mxu0 %v273
        %v398 = vpop.f32.mrf.mxu0
        %v399 = vadd.f32 %v290, %v398
        %v400 = vpop.f32.mrf.mxu0
        %v401 = vpop.f32.mrf.mxu0
        %v402 = vadd.f32 %v290, %v401
        %v403 = vpop.f32.mrf.mxu0
        %404 = vmatprep.mubr.bf16.mxu0 0
        %405 = vmatmul.mubr.bf16.gmra.mxu0 %v274
        %v406 = vpop.f32.mrf.mxu0
        %v407 = vadd.f32 %v290, %v406
        %v408 = vpop.f32.mrf.mxu0
        %v409 = vpop.f32.mrf.mxu0
        %v410 = vadd.f32 %v290, %v409
        %v411 = vpop.f32.mrf.mxu0
        %412 = vmatprep.mubr.bf16.mxu0 0
        %413 = vmatmul.mubr.bf16.gmra.mxu0 %v275
        %v414 = vpop.f32.mrf.mxu0
        %v415 = vadd.f32 %v290, %v414
        %v416 = vpop.f32.mrf.mxu0
        %v417 = vpop.f32.mrf.mxu0
        %v418 = vadd.f32 %v290, %v417
        %v419 = vpop.f32.mrf.mxu0
        %420 = vmatprep.mubr.bf16.mxu0 0
        %421 = vmatmul.mubr.bf16.gmra.mxu0 %v276
        %v422 = vpop.f32.mrf.mxu0
        %v423 = vadd.f32 %v290, %v422
        %v424 = vpop.f32.mrf.mxu0
        %v425 = vpop.f32.mrf.mxu0
        %v426 = vadd.f32 %v290, %v425
        %v427 = vpop.f32.mrf.mxu0
        %428 = vmatprep.mubr.bf16.mxu0 0
        %429 = vmatmul.mubr.bf16.gmra.mxu0 %v277
        %v430 = vpop.f32.mrf.mxu0
        %v431 = vadd.f32 %v290, %v430
        %v432 = vpop.f32.mrf.mxu0
        %v433 = vpop.f32.mrf.mxu0
        %v434 = vadd.f32 %v290, %v433
        %v435 = vpop.f32.mrf.mxu0
        %436 = vmatprep.mubr.bf16.mxu0 0
        %437 = vmatmul.mubr.bf16.gmra.mxu0 %v278
        %v438 = vpop.f32.mrf.mxu0
        %v439 = vadd.f32 %v290, %v438
        %v440 = vpop.f32.mrf.mxu0
        %v441 = vpop.f32.mrf.mxu0
        %v442 = vadd.f32 %v290, %v441
        %v443 = vpop.f32.mrf.mxu0
        %444 = vmatprep.mubr.bf16.mxu0 0
        %445 = vmatmul.mubr.bf16.gmra.mxu0 %v279
        %v446 = vpop.f32.mrf.mxu0
        %v447 = vadd.f32 %v290, %v446
        %v448 = vpop.f32.mrf.mxu0
        %v449 = vpop.f32.mrf.mxu0
        %v450 = vadd.f32 %v290, %v449
        %v451 = vpop.f32.mrf.mxu0
        %452 = vmatprep.mubr.bf16.mxu0 0
        %453 = vmatmul.mubr.bf16.gmra.mxu0 %v280
        %v454 = vpop.f32.mrf.mxu0
        %v455 = vadd.f32 %v290, %v454
        %v456 = vpop.f32.mrf.mxu0
        %v457 = vpop.f32.mrf.mxu0
        %v458 = vadd.f32 %v290, %v457
        %v459 = vpop.f32.mrf.mxu0
        %460 = vmatprep.mubr.bf16.mxu0 0
        %461 = vmatmul.mubr.bf16.gmra.mxu0 %v281
        %v462 = vpop.f32.mrf.mxu0
        %v463 = vadd.f32 %v290, %v462
        %v464 = vpop.f32.mrf.mxu0
        %v465 = vpop.f32.mrf.mxu0
        %v466 = vadd.f32 %v290, %v465
        %v467 = vpop.f32.mrf.mxu0
        %468 = vmatprep.mubr.bf16.mxu0 0
        %469 = vmatmul.mubr.bf16.gmra.mxu0 %v282
        %v470 = vpop.f32.mrf.mxu0
        %v471 = vadd.f32 %v290, %v470
        %v472 = vpop.f32.mrf.mxu0
        %v473 = vpop.f32.mrf.mxu0
        %v474 = vadd.f32 %v290, %v473
        %v475 = vpop.f32.mrf.mxu0
        %476 = vmatprep.mubr.bf16.mxu0 0
        %477 = vmatmul.mubr.bf16.gmra.mxu0 %v283
        %v478 = vpop.f32.mrf.mxu0
        %v479 = vadd.f32 %v290, %v478
        %v480 = vpop.f32.mrf.mxu0
        %v481 = vpop.f32.mrf.mxu0
        %v482 = vadd.f32 %v290, %v481
        %v483 = vpop.f32.mrf.mxu0
        %484 = vmatprep.mubr.bf16.mxu0 0
        %485 = vmatmul.mubr.bf16.gmra.mxu0 %v284
        %v486 = vpop.f32.mrf.mxu0
        %v487 = vadd.f32 %v290, %v486
        %v488 = vpop.f32.mrf.mxu0
        %v489 = vpop.f32.mrf.mxu0
        %v490 = vadd.f32 %v290, %v489
        %v491 = vpop.f32.mrf.mxu0
        %492 = vmatprep.mubr.bf16.mxu0 0
        %493 = vmatmul.mubr.bf16.gmra.mxu0 %v285
        %v494 = vpop.f32.mrf.mxu0
        %v495 = vadd.f32 %v290, %v494
        %v496 = vpop.f32.mrf.mxu0
        %v497 = vpop.f32.mrf.mxu0
        %v498 = vadd.f32 %v290, %v497
        %v499 = vpop.f32.mrf.mxu0
        %500 = vdwg.mxu0
        %vm501 = vcmp.ge.f32.partialorder %v375, 0.0
        %vm502 = vcmp.ge.f32.partialorder %v378, 0.0
        %vm503 = vcmp.ge.f32.partialorder %v383, 0.0
        %vm504 = vcmp.ge.f32.partialorder %v386, 0.0
        %vm505 = vcmp.ge.f32.partialorder %v391, 0.0
        %vm506 = vcmp.ge.f32.partialorder %v394, 0.0
        %vm507 = vcmp.ge.f32.partialorder %v399, 0.0
        %vm508 = vcmp.ge.f32.partialorder %v402, 0.0
        %vm509 = vcmp.ge.f32.partialorder %v407, 0.0
        %vm510 = vcmp.ge.f32.partialorder %v410, 0.0
        %vm511 = vcmp.ge.f32.partialorder %v415, 0.0
        %vm512 = vcmp.ge.f32.partialorder %v418, 0.0
        %vm513 = vcmp.ge.f32.partialorder %v423, 0.0
        %vm514 = vcmp.ge.f32.partialorder %v426, 0.0
        %vm515 = vcmp.ge.f32.partialorder %v431, 0.0
        %vm516 = vcmp.ge.f32.partialorder %v434, 0.0
        %vm517 = vcmp.ge.f32.partialorder %v439, 0.0
        %vm518 = vcmp.ge.f32.partialorder %v442, 0.0
        %vm519 = vcmp.ge.f32.partialorder %v447, 0.0
        %vm520 = vcmp.ge.f32.partialorder %v450, 0.0
        %vm521 = vcmp.ge.f32.partialorder %v455, 0.0
        %vm522 = vcmp.ge.f32.partialorder %v458, 0.0
        %vm523 = vcmp.ge.f32.partialorder %v463, 0.0
        %vm524 = vcmp.ge.f32.partialorder %v466, 0.0
        %vm525 = vcmp.ge.f32.partialorder %v471, 0.0
        %vm526 = vcmp.ge.f32.partialorder %v474, 0.0
        %vm527 = vcmp.ge.f32.partialorder %v479, 0.0
        %vm528 = vcmp.ge.f32.partialorder %v482, 0.0
        %vm529 = vcmp.ge.f32.partialorder %v487, 0.0
        %vm530 = vcmp.ge.f32.partialorder %v490, 0.0
        %vm531 = vcmp.ge.f32.partialorder %v495, 0.0
        %vm532 = vcmp.ge.f32.partialorder %v498, 0.0
        %v533 = vmul.f32 %v375, 0.01
        %v534 = vmul.f32 %v378, 0.01
        %v535 = vmul.f32 %v383, 0.01
        %v536 = vmul.f32 %v386, 0.01
        %v537 = vmul.f32 %v391, 0.01
        %v538 = vmul.f32 %v394, 0.01
        %v539 = vmul.f32 %v399, 0.01
        %v540 = vmul.f32 %v402, 0.01
        %v541 = vmul.f32 %v407, 0.01
        %v542 = vmul.f32 %v410, 0.01
        %v543 = vmul.f32 %v415, 0.01
        %v544 = vmul.f32 %v418, 0.01
        %v545 = vmul.f32 %v423, 0.01
        %v546 = vmul.f32 %v426, 0.01
        %v547 = vmul.f32 %v431, 0.01
        %v548 = vmul.f32 %v434, 0.01
        %v549 = vmul.f32 %v439, 0.01
        %v550 = vmul.f32 %v442, 0.01
        %v551 = vmul.f32 %v447, 0.01
        %v552 = vmul.f32 %v450, 0.01
        %v553 = vmul.f32 %v455, 0.01
        %v554 = vmul.f32 %v458, 0.01
        %v555 = vmul.f32 %v463, 0.01
        %v556 = vmul.f32 %v466, 0.01
        %v557 = vmul.f32 %v471, 0.01
        %v558 = vmul.f32 %v474, 0.01
        %v559 = vmul.f32 %v479, 0.01
        %v560 = vmul.f32 %v482, 0.01
        %v561 = vmul.f32 %v487, 0.01
        %v562 = vmul.f32 %v490, 0.01
        %v563 = vmul.f32 %v495, 0.01
        %v564 = vmul.f32 %v498, 0.01
        %v565 = vsel %vm501, %v375, %v533
        %v566 = vsel %vm502, %v378, %v534
        %v567 = vsel %vm503, %v383, %v535
        %v568 = vsel %vm504, %v386, %v536
        %v569 = vsel %vm505, %v391, %v537
        %v570 = vsel %vm506, %v394, %v538
        %v571 = vsel %vm507, %v399, %v539
        %v572 = vsel %vm508, %v402, %v540
        %v573 = vsel %vm509, %v407, %v541
        %v574 = vsel %vm510, %v410, %v542
        %v575 = vsel %vm511, %v415, %v543
        %v576 = vsel %vm512, %v418, %v544
        %v577 = vsel %vm513, %v423, %v545
        %v578 = vsel %vm514, %v426, %v546
        %v579 = vsel %vm515, %v431, %v547
        %v580 = vsel %vm516, %v434, %v548
        %v581 = vsel %vm517, %v439, %v549
        %v582 = vsel %vm518, %v442, %v550
        %v583 = vsel %vm519, %v447, %v551
        %v584 = vsel %vm520, %v450, %v552
        %v585 = vsel %vm521, %v455, %v553
        %v586 = vsel %vm522, %v458, %v554
        %v587 = vsel %vm523, %v463, %v555
        %v588 = vsel %vm524, %v466, %v556
        %v589 = vsel %vm525, %v471, %v557
        %v590 = vsel %vm526, %v474, %v558
        %v591 = vsel %vm527, %v479, %v559
        %v592 = vsel %vm528, %v482, %v560
        %v593 = vsel %vm529, %v487, %v561
        %v594 = vsel %vm530, %v490, %v562
        %v595 = vsel %vm531, %v495, %v563
        %v596 = vsel %vm532, %v498, %v564
        %s597 = scalar_lea.vmem [#allocation5], 64
        %v598 = vld [vmem:[%s597] sm:$0xf]
        %v599 = vld [vmem:[%s597 + $0x4] sm:$0xf]
        %v600 = vld [vmem:[%s597 + $0x8] sm:$0xf]
        %v601 = vld [vmem:[%s597 + $0xc] sm:$0xf]
        %v602 = vld [vmem:[%s597 + $0x10] sm:$0xf]
        %v603 = vld [vmem:[%s597 + $0x14] sm:$0xf]
        %v604 = vld [vmem:[%s597 + $0x18] sm:$0xf]
        %v605 = vld [vmem:[%s597 + $0x1c] sm:$0xf]
        %v606 = vld [vmem:[%s597 + $0x20] sm:$0xf]
        %v607 = vld [vmem:[%s597 + $0x24] sm:$0xf]
        %v608 = vld [vmem:[%s597 + $0x28] sm:$0xf]
        %v609 = vld [vmem:[%s597 + $0x2c] sm:$0xf]
        %v610 = vld [vmem:[%s597 + $0x30] sm:$0xf]
        %v611 = vld [vmem:[%s597 + $0x34] sm:$0xf]
        %v612 = vld [vmem:[%s597 + $0x38] sm:$0xf]
        %v613 = vld [vmem:[%s597 + $0x3c] sm:$0xf]
        %s614 = scalar_lea.vmem [#allocation7], 1
        %v615 = vld [vmem:[%s614] sm:$0x1]
        %v616 = vpack.c.bf16 %v566, %v565
        %v617 = vpack.c.bf16 %v568, %v567
        %v618 = vpack.c.bf16 %v570, %v569
        %v619 = vpack.c.bf16 %v572, %v571
        %v620 = vpack.c.bf16 %v574, %v573
        %v621 = vpack.c.bf16 %v576, %v575
        %v622 = vpack.c.bf16 %v578, %v577
        %v623 = vpack.c.bf16 %v580, %v579
        %v624 = vpack.c.bf16 %v582, %v581
        %v625 = vpack.c.bf16 %v584, %v583
        %v626 = vpack.c.bf16 %v586, %v585
        %v627 = vpack.c.bf16 %v588, %v587
        %v628 = vpack.c.bf16 %v590, %v589
        %v629 = vpack.c.bf16 %v592, %v591
        %v630 = vpack.c.bf16 %v594, %v593
        %v631 = vpack.c.bf16 %v596, %v595
        %v633 = vlaneseq
        %v634 = vshrl.u32 %v633, 7
        %v635 = vsub.s32 0, %v634
        %v636 = vrot.slane %v615, %v635
        %v654 = vunpack.c.l.b16 %v598
        %v655 = vunpack.c.l.b16 %v599
        %v656 = vunpack.c.l.b16 %v600
        %v657 = vunpack.c.l.b16 %v601
        %v658 = vunpack.c.l.b16 %v602
        %v659 = vunpack.c.l.b16 %v603
        %v660 = vunpack.c.l.b16 %v604
        %v661 = vunpack.c.l.b16 %v605
        %v662 = vunpack.c.l.b16 %v606
        %v663 = vunpack.c.l.b16 %v607
        %v664 = vunpack.c.l.b16 %v608
        %v665 = vunpack.c.l.b16 %v609
        %v666 = vunpack.c.l.b16 %v610
        %v667 = vunpack.c.l.b16 %v611
        %v668 = vunpack.c.l.b16 %v612
        %v669 = vunpack.c.l.b16 %v613
        %v670 = vpack.c.b16 %v655, %v654
        %v671 = vpack.c.b16 %v657, %v656
        %v672 = vpack.c.b16 %v659, %v658
        %v673 = vpack.c.b16 %v661, %v660
        %v674 = vpack.c.b16 %v663, %v662
        %v675 = vpack.c.b16 %v665, %v664
        %v676 = vpack.c.b16 %v667, %v666
        %v677 = vpack.c.b16 %v669, %v668
        %686 = vmatprep.subr.bf16.mxu0 0
        %687 = vmatpush1.bf16.msra.mxu0 %v677
        %688 = vmatprep.subr.bf16.mxu0 0
        %689 = vmatpush1.bf16.msra.mxu0 %v676
        %690 = vmatprep.subr.bf16.mxu0 0
        %691 = vmatpush1.bf16.msra.mxu0 %v675
        %692 = vmatprep.subr.bf16.mxu0 0
        %693 = vmatpush1.bf16.msra.mxu0 %v674
        %694 = vmatprep.subr.bf16.mxu0 0
        %695 = vmatpush1.bf16.msra.mxu0 %v673
        %696 = vmatprep.subr.bf16.mxu0 0
        %697 = vmatpush1.bf16.msra.mxu0 %v672
        %698 = vmatprep.subr.bf16.mxu0 0
        %699 = vmatpush1.bf16.msra.mxu0 %v671
        %700 = vmatprep.subr.bf16.mxu0 0
        %701 = vmatpush1.bf16.msra.mxu0 %v670
        %702 = vmatprep.subr.bf16.mxu0 0
        %703 = vmatpush2.bf16.msra.mxu0 0
        %704 = vmatprep.subr.bf16.mxu0 0
        %705 = vmatpush2.bf16.msra.mxu0 0
        %706 = vmatprep.subr.bf16.mxu0 0
        %707 = vmatpush2.bf16.msra.mxu0 0
        %708 = vmatprep.subr.bf16.mxu0 0
        %709 = vmatpush2.bf16.msra.mxu0 0
        %710 = vmatprep.subr.bf16.mxu0 0
        %711 = vmatpush2.bf16.msra.mxu0 0
        %712 = vmatprep.subr.bf16.mxu0 0
        %713 = vmatpush2.bf16.msra.mxu0 0
        %714 = vmatprep.subr.bf16.mxu0 0
        %715 = vmatpush2.bf16.msra.mxu0 0
        %716 = vmatprep.subr.bf16.mxu0 0
        %717 = vmatpush2.bf16.msra.mxu0 0
        %718 = vmatprep.mubr.bf16.mxu0 0
        %719 = vmatmul.mubr.bf16.gmra.mxu0 %v616
        %v720 = vpop.f32.mrf.mxu0
        %v721 = vadd.f32 %v636, %v720
        %v722 = vpop.f32.mrf.mxu0
        %v723 = vpop.f32.mrf.mxu0
        %v724 = vadd.f32 %v636, %v723
        %v725 = vpop.f32.mrf.mxu0
        %726 = vmatprep.mubr.bf16.mxu0 0
        %727 = vmatmul.mubr.bf16.gmra.mxu0 %v617
        %v728 = vpop.f32.mrf.mxu0
        %v729 = vadd.f32 %v636, %v728
        %v730 = vpop.f32.mrf.mxu0
        %v731 = vpop.f32.mrf.mxu0
        %v732 = vadd.f32 %v636, %v731
        %v733 = vpop.f32.mrf.mxu0
        %734 = vmatprep.mubr.bf16.mxu0 0
        %735 = vmatmul.mubr.bf16.gmra.mxu0 %v618
        %v736 = vpop.f32.mrf.mxu0
        %v737 = vadd.f32 %v636, %v736
        %v738 = vpop.f32.mrf.mxu0
        %v739 = vpop.f32.mrf.mxu0
        %v740 = vadd.f32 %v636, %v739
        %v741 = vpop.f32.mrf.mxu0
        %742 = vmatprep.mubr.bf16.mxu0 0
        %743 = vmatmul.mubr.bf16.gmra.mxu0 %v619
        %v744 = vpop.f32.mrf.mxu0
        %v745 = vadd.f32 %v636, %v744
        %v746 = vpop.f32.mrf.mxu0
        %v747 = vpop.f32.mrf.mxu0
        %v748 = vadd.f32 %v636, %v747
        %v749 = vpop.f32.mrf.mxu0
        %750 = vmatprep.mubr.bf16.mxu0 0
        %751 = vmatmul.mubr.bf16.gmra.mxu0 %v620
        %v752 = vpop.f32.mrf.mxu0
        %v753 = vadd.f32 %v636, %v752
        %v754 = vpop.f32.mrf.mxu0
        %v755 = vpop.f32.mrf.mxu0
        %v756 = vadd.f32 %v636, %v755
        %v757 = vpop.f32.mrf.mxu0
        %758 = vmatprep.mubr.bf16.mxu0 0
        %759 = vmatmul.mubr.bf16.gmra.mxu0 %v621
        %v760 = vpop.f32.mrf.mxu0
        %v761 = vadd.f32 %v636, %v760
        %v762 = vpop.f32.mrf.mxu0
        %v763 = vpop.f32.mrf.mxu0
        %v764 = vadd.f32 %v636, %v763
        %v765 = vpop.f32.mrf.mxu0
        %766 = vmatprep.mubr.bf16.mxu0 0
        %767 = vmatmul.mubr.bf16.gmra.mxu0 %v622
        %v768 = vpop.f32.mrf.mxu0
        %v769 = vadd.f32 %v636, %v768
        %v770 = vpop.f32.mrf.mxu0
        %v771 = vpop.f32.mrf.mxu0
        %v772 = vadd.f32 %v636, %v771
        %v773 = vpop.f32.mrf.mxu0
        %774 = vmatprep.mubr.bf16.mxu0 0
        %775 = vmatmul.mubr.bf16.gmra.mxu0 %v623
        %v776 = vpop.f32.mrf.mxu0
        %v777 = vadd.f32 %v636, %v776
        %v778 = vpop.f32.mrf.mxu0
        %v779 = vpop.f32.mrf.mxu0
        %v780 = vadd.f32 %v636, %v779
        %v781 = vpop.f32.mrf.mxu0
        %782 = vmatprep.mubr.bf16.mxu0 0
        %783 = vmatmul.mubr.bf16.gmra.mxu0 %v624
        %v784 = vpop.f32.mrf.mxu0
        %v785 = vadd.f32 %v636, %v784
        %v786 = vpop.f32.mrf.mxu0
        %v787 = vpop.f32.mrf.mxu0
        %v788 = vadd.f32 %v636, %v787
        %v789 = vpop.f32.mrf.mxu0
        %790 = vmatprep.mubr.bf16.mxu0 0
        %791 = vmatmul.mubr.bf16.gmra.mxu0 %v625
        %v792 = vpop.f32.mrf.mxu0
        %v793 = vadd.f32 %v636, %v792
        %v794 = vpop.f32.mrf.mxu0
        %v795 = vpop.f32.mrf.mxu0
        %v796 = vadd.f32 %v636, %v795
        %v797 = vpop.f32.mrf.mxu0
        %798 = vmatprep.mubr.bf16.mxu0 0
        %799 = vmatmul.mubr.bf16.gmra.mxu0 %v626
        %v800 = vpop.f32.mrf.mxu0
        %v801 = vadd.f32 %v636, %v800
        %v802 = vpop.f32.mrf.mxu0
        %v803 = vpop.f32.mrf.mxu0
        %v804 = vadd.f32 %v636, %v803
        %v805 = vpop.f32.mrf.mxu0
        %806 = vmatprep.mubr.bf16.mxu0 0
        %807 = vmatmul.mubr.bf16.gmra.mxu0 %v627
        %v808 = vpop.f32.mrf.mxu0
        %v809 = vadd.f32 %v636, %v808
        %v810 = vpop.f32.mrf.mxu0
        %v811 = vpop.f32.mrf.mxu0
        %v812 = vadd.f32 %v636, %v811
        %v813 = vpop.f32.mrf.mxu0
        %814 = vmatprep.mubr.bf16.mxu0 0
        %815 = vmatmul.mubr.bf16.gmra.mxu0 %v628
        %v816 = vpop.f32.mrf.mxu0
        %v817 = vadd.f32 %v636, %v816
        %v818 = vpop.f32.mrf.mxu0
        %v819 = vpop.f32.mrf.mxu0
        %v820 = vadd.f32 %v636, %v819
        %v821 = vpop.f32.mrf.mxu0
        %822 = vmatprep.mubr.bf16.mxu0 0
        %823 = vmatmul.mubr.bf16.gmra.mxu0 %v629
        %v824 = vpop.f32.mrf.mxu0
        %v825 = vadd.f32 %v636, %v824
        %v826 = vpop.f32.mrf.mxu0
        %v827 = vpop.f32.mrf.mxu0
        %v828 = vadd.f32 %v636, %v827
        %v829 = vpop.f32.mrf.mxu0
        %830 = vmatprep.mubr.bf16.mxu0 0
        %831 = vmatmul.mubr.bf16.gmra.mxu0 %v630
        %v832 = vpop.f32.mrf.mxu0
        %v833 = vadd.f32 %v636, %v832
        %v834 = vpop.f32.mrf.mxu0
        %v835 = vpop.f32.mrf.mxu0
        %v836 = vadd.f32 %v636, %v835
        %v837 = vpop.f32.mrf.mxu0
        %838 = vmatprep.mubr.bf16.mxu0 0
        %839 = vmatmul.mubr.bf16.gmra.mxu0 %v631
        %v840 = vpop.f32.mrf.mxu0
        %v841 = vadd.f32 %v636, %v840
        %v842 = vpop.f32.mrf.mxu0
        %v843 = vpop.f32.mrf.mxu0
        %v844 = vadd.f32 %v636, %v843
        %v845 = vpop.f32.mrf.mxu0
        %846 = vdwg.mxu0
        %v847 = vsub.f32 0.0, %v721
        %v848 = vsub.f32 0.0, %v724
        %v849 = vsub.f32 0.0, %v729
        %v850 = vsub.f32 0.0, %v732
        %v851 = vsub.f32 0.0, %v737
        %v852 = vsub.f32 0.0, %v740
        %v853 = vsub.f32 0.0, %v745
        %v854 = vsub.f32 0.0, %v748
        %v855 = vsub.f32 0.0, %v753
        %v856 = vsub.f32 0.0, %v756
        %v857 = vsub.f32 0.0, %v761
        %v858 = vsub.f32 0.0, %v764
        %v859 = vsub.f32 0.0, %v769
        %v860 = vsub.f32 0.0, %v772
        %v861 = vsub.f32 0.0, %v777
        %v862 = vsub.f32 0.0, %v780
        %v863 = vsub.f32 0.0, %v785
        %v864 = vsub.f32 0.0, %v788
        %v865 = vsub.f32 0.0, %v793
        %v866 = vsub.f32 0.0, %v796
        %v867 = vsub.f32 0.0, %v801
        %v868 = vsub.f32 0.0, %v804
        %v869 = vsub.f32 0.0, %v809
        %v870 = vsub.f32 0.0, %v812
        %v871 = vsub.f32 0.0, %v817
        %v872 = vsub.f32 0.0, %v820
        %v873 = vsub.f32 0.0, %v825
        %v874 = vsub.f32 0.0, %v828
        %v875 = vsub.f32 0.0, %v833
        %v876 = vsub.f32 0.0, %v836
        %v877 = vsub.f32 0.0, %v841
        %v878 = vsub.f32 0.0, %v844
        %v879 = vmul.f32 %v847, 1.442695
        %v880 = vpow.pop %v879
        %v881 = vmul.f32 %v848, 1.442695
        %v882 = vpow.pop %v881
        %v883 = vmul.f32 %v849, 1.442695
        %v884 = vpow.pop %v883
        %v885 = vmul.f32 %v850, 1.442695
        %v886 = vpow.pop %v885
        %v887 = vmul.f32 %v851, 1.442695
        %v888 = vpow.pop %v887
        %v889 = vmul.f32 %v852, 1.442695
        %v890 = vpow.pop %v889
        %v891 = vmul.f32 %v853, 1.442695
        %v892 = vpow.pop %v891
        %v893 = vmul.f32 %v854, 1.442695
        %v894 = vpow.pop %v893
        %v895 = vmul.f32 %v855, 1.442695
        %v896 = vpow.pop %v895
        %v897 = vmul.f32 %v856, 1.442695
        %v898 = vpow.pop %v897
        %v899 = vmul.f32 %v857, 1.442695
        %v900 = vpow.pop %v899
        %v901 = vmul.f32 %v858, 1.442695
        %v902 = vpow.pop %v901
        %v903 = vmul.f32 %v859, 1.442695
        %v904 = vpow.pop %v903
        %v905 = vmul.f32 %v860, 1.442695
        %v906 = vpow.pop %v905
        %v907 = vmul.f32 %v861, 1.442695
        %v908 = vpow.pop %v907
        %v909 = vmul.f32 %v862, 1.442695
        %v910 = vpow.pop %v909
        %v911 = vmul.f32 %v863, 1.442695
        %v912 = vpow.pop %v911
        %v913 = vmul.f32 %v864, 1.442695
        %v914 = vpow.pop %v913
        %v915 = vmul.f32 %v865, 1.442695
        %v916 = vpow.pop %v915
        %v917 = vmul.f32 %v866, 1.442695
        %v918 = vpow.pop %v917
        %v919 = vmul.f32 %v867, 1.442695
        %v920 = vpow.pop %v919
        %v921 = vmul.f32 %v868, 1.442695
        %v922 = vpow.pop %v921
        %v923 = vmul.f32 %v869, 1.442695
        %v924 = vpow.pop %v923
        %v925 = vmul.f32 %v870, 1.442695
        %v926 = vpow.pop %v925
        %v927 = vmul.f32 %v871, 1.442695
        %v928 = vpow.pop %v927
        %v929 = vmul.f32 %v872, 1.442695
        %v930 = vpow.pop %v929
        %v931 = vmul.f32 %v873, 1.442695
        %v932 = vpow.pop %v931
        %v933 = vmul.f32 %v874, 1.442695
        %v934 = vpow.pop %v933
        %v935 = vmul.f32 %v875, 1.442695
        %v936 = vpow.pop %v935
        %v937 = vmul.f32 %v876, 1.442695
        %v938 = vpow.pop %v937
        %v939 = vmul.f32 %v877, 1.442695
        %v940 = vpow.pop %v939
        %v941 = vmul.f32 %v878, 1.442695
        %v942 = vpow.pop %v941
        %v943 = vadd.f32 %v880, 1.0
        %v944 = vadd.f32 %v882, 1.0
        %v945 = vadd.f32 %v884, 1.0
        %v946 = vadd.f32 %v886, 1.0
        %v947 = vadd.f32 %v888, 1.0
        %v948 = vadd.f32 %v890, 1.0
        %v949 = vadd.f32 %v892, 1.0
        %v950 = vadd.f32 %v894, 1.0
        %v951 = vadd.f32 %v896, 1.0
        %v952 = vadd.f32 %v898, 1.0
        %v953 = vadd.f32 %v900, 1.0
        %v954 = vadd.f32 %v902, 1.0
        %v955 = vadd.f32 %v904, 1.0
        %v956 = vadd.f32 %v906, 1.0
        %v957 = vadd.f32 %v908, 1.0
        %v958 = vadd.f32 %v910, 1.0
        %v959 = vadd.f32 %v912, 1.0
        %v960 = vadd.f32 %v914, 1.0
        %v961 = vadd.f32 %v916, 1.0
        %v962 = vadd.f32 %v918, 1.0
        %v963 = vadd.f32 %v920, 1.0
        %v964 = vadd.f32 %v922, 1.0
        %v965 = vadd.f32 %v924, 1.0
        %v966 = vadd.f32 %v926, 1.0
        %v967 = vadd.f32 %v928, 1.0
        %v968 = vadd.f32 %v930, 1.0
        %v969 = vadd.f32 %v932, 1.0
        %v970 = vadd.f32 %v934, 1.0
        %v971 = vadd.f32 %v936, 1.0
        %v972 = vadd.f32 %v938, 1.0
        %v973 = vadd.f32 %v940, 1.0
        %v974 = vadd.f32 %v942, 1.0
        %v975 = vrcp.pop %v943
        %v976 = vrcp.pop %v944
        %v977 = vrcp.pop %v945
        %v978 = vrcp.pop %v946
        %v979 = vrcp.pop %v947
        %v980 = vrcp.pop %v948
        %v981 = vrcp.pop %v949
        %v982 = vrcp.pop %v950
        %v983 = vrcp.pop %v951
        %v984 = vrcp.pop %v952
        %v985 = vrcp.pop %v953
        %v986 = vrcp.pop %v954
        %v987 = vrcp.pop %v955
        %v988 = vrcp.pop %v956
        %v989 = vrcp.pop %v957
        %v990 = vrcp.pop %v958
        %v991 = vrcp.pop %v959
        %v992 = vrcp.pop %v960
        %v993 = vrcp.pop %v961
        %v994 = vrcp.pop %v962
        %v995 = vrcp.pop %v963
        %v996 = vrcp.pop %v964
        %v997 = vrcp.pop %v965
        %v998 = vrcp.pop %v966
        %v999 = vrcp.pop %v967
        %v1000 = vrcp.pop %v968
        %v1001 = vrcp.pop %v969
        %v1002 = vrcp.pop %v970
        %v1003 = vrcp.pop %v971
        %v1004 = vrcp.pop %v972
        %v1005 = vrcp.pop %v973
        %v1006 = vrcp.pop %v974
        %s1007 = scalar_lea.vmem [#allocation5], 128
        %v1008 = vld [vmem:[%s1007] sm:$0xf]
        %v1009 = vld [vmem:[%s1007 + $0x4] sm:$0xf]
        %v1010 = vld [vmem:[%s1007 + $0x8] sm:$0xf]
        %v1011 = vld [vmem:[%s1007 + $0xc] sm:$0xf]
        %v1012 = vld [vmem:[%s1007 + $0x10] sm:$0xf]
        %v1013 = vld [vmem:[%s1007 + $0x14] sm:$0xf]
        %v1014 = vld [vmem:[%s1007 + $0x18] sm:$0xf]
        %v1015 = vld [vmem:[%s1007 + $0x1c] sm:$0xf]
        %v1016 = vld [vmem:[%s1007 + $0x20] sm:$0xf]
        %v1017 = vld [vmem:[%s1007 + $0x24] sm:$0xf]
        %v1018 = vld [vmem:[%s1007 + $0x28] sm:$0xf]
        %v1019 = vld [vmem:[%s1007 + $0x2c] sm:$0xf]
        %v1020 = vld [vmem:[%s1007 + $0x30] sm:$0xf]
        %v1021 = vld [vmem:[%s1007 + $0x34] sm:$0xf]
        %v1022 = vld [vmem:[%s1007 + $0x38] sm:$0xf]
        %v1023 = vld [vmem:[%s1007 + $0x3c] sm:$0xf]
        %s1024 = scalar_lea.vmem [#allocation7], 2
        %v1025 = vld [vmem:[%s1024] sm:$0x1]
        %v1026 = vpack.c.bf16 %v976, %v975
        %v1027 = vpack.c.bf16 %v978, %v977
        %v1028 = vpack.c.bf16 %v980, %v979
        %v1029 = vpack.c.bf16 %v982, %v981
        %v1030 = vpack.c.bf16 %v984, %v983
        %v1031 = vpack.c.bf16 %v986, %v985
        %v1032 = vpack.c.bf16 %v988, %v987
        %v1033 = vpack.c.bf16 %v990, %v989
        %v1034 = vpack.c.bf16 %v992, %v991
        %v1035 = vpack.c.bf16 %v994, %v993
        %v1036 = vpack.c.bf16 %v996, %v995
        %v1037 = vpack.c.bf16 %v998, %v997
        %v1038 = vpack.c.bf16 %v1000, %v999
        %v1039 = vpack.c.bf16 %v1002, %v1001
        %v1040 = vpack.c.bf16 %v1004, %v1003
        %v1041 = vpack.c.bf16 %v1006, %v1005
        %v1043 = vlaneseq
        %v1044 = vshrl.u32 %v1043, 7
        %v1045 = vsub.s32 0, %v1044
        %v1046 = vrot.slane %v1025, %v1045
        %v1064 = vunpack.c.l.b16 %v1008
        %v1065 = vunpack.c.l.b16 %v1009
        %v1066 = vunpack.c.l.b16 %v1010
        %v1067 = vunpack.c.l.b16 %v1011
        %v1068 = vunpack.c.l.b16 %v1012
        %v1069 = vunpack.c.l.b16 %v1013
        %v1070 = vunpack.c.l.b16 %v1014
        %v1071 = vunpack.c.l.b16 %v1015
        %v1072 = vunpack.c.l.b16 %v1016
        %v1073 = vunpack.c.l.b16 %v1017
        %v1074 = vunpack.c.l.b16 %v1018
        %v1075 = vunpack.c.l.b16 %v1019
        %v1076 = vunpack.c.l.b16 %v1020
        %v1077 = vunpack.c.l.b16 %v1021
        %v1078 = vunpack.c.l.b16 %v1022
        %v1079 = vunpack.c.l.b16 %v1023
        %v1080 = vpack.c.b16 %v1065, %v1064
        %v1081 = vpack.c.b16 %v1067, %v1066
        %v1082 = vpack.c.b16 %v1069, %v1068
        %v1083 = vpack.c.b16 %v1071, %v1070
        %v1084 = vpack.c.b16 %v1073, %v1072
        %v1085 = vpack.c.b16 %v1075, %v1074
        %v1086 = vpack.c.b16 %v1077, %v1076
        %v1087 = vpack.c.b16 %v1079, %v1078
        %1096 = vmatprep.subr.bf16.mxu0 0
        %1097 = vmatpush1.bf16.msra.mxu0 %v1087
        %1098 = vmatprep.subr.bf16.mxu0 0
        %1099 = vmatpush1.bf16.msra.mxu0 %v1086
        %1100 = vmatprep.subr.bf16.mxu0 0
        %1101 = vmatpush1.bf16.msra.mxu0 %v1085
        %1102 = vmatprep.subr.bf16.mxu0 0
        %1103 = vmatpush1.bf16.msra.mxu0 %v1084
        %1104 = vmatprep.subr.bf16.mxu0 0
        %1105 = vmatpush1.bf16.msra.mxu0 %v1083
        %1106 = vmatprep.subr.bf16.mxu0 0
        %1107 = vmatpush1.bf16.msra.mxu0 %v1082
        %1108 = vmatprep.subr.bf16.mxu0 0
        %1109 = vmatpush1.bf16.msra.mxu0 %v1081
        %1110 = vmatprep.subr.bf16.mxu0 0
        %1111 = vmatpush1.bf16.msra.mxu0 %v1080
        %1112 = vmatprep.subr.bf16.mxu0 0
        %1113 = vmatpush2.bf16.msra.mxu0 0
        %1114 = vmatprep.subr.bf16.mxu0 0
        %1115 = vmatpush2.bf16.msra.mxu0 0
        %1116 = vmatprep.subr.bf16.mxu0 0
        %1117 = vmatpush2.bf16.msra.mxu0 0
        %1118 = vmatprep.subr.bf16.mxu0 0
        %1119 = vmatpush2.bf16.msra.mxu0 0
        %1120 = vmatprep.subr.bf16.mxu0 0
        %1121 = vmatpush2.bf16.msra.mxu0 0
        %1122 = vmatprep.subr.bf16.mxu0 0
        %1123 = vmatpush2.bf16.msra.mxu0 0
        %1124 = vmatprep.subr.bf16.mxu0 0
        %1125 = vmatpush2.bf16.msra.mxu0 0
        %1126 = vmatprep.subr.bf16.mxu0 0
        %1127 = vmatpush2.bf16.msra.mxu0 0
        %1128 = vmatprep.mubr.bf16.mxu0 0
        %1129 = vmatmul.mubr.bf16.gmra.mxu0 %v1026
        %v1130 = vpop.f32.mrf.mxu0
        %v1131 = vadd.f32 %v1046, %v1130
        %v1132 = vpop.f32.mrf.mxu0
        %v1133 = vpop.f32.mrf.mxu0
        %v1134 = vadd.f32 %v1046, %v1133
        %v1135 = vpop.f32.mrf.mxu0
        %1136 = vmatprep.mubr.bf16.mxu0 0
        %1137 = vmatmul.mubr.bf16.gmra.mxu0 %v1027
        %v1138 = vpop.f32.mrf.mxu0
        %v1139 = vadd.f32 %v1046, %v1138
        %v1140 = vpop.f32.mrf.mxu0
        %v1141 = vpop.f32.mrf.mxu0
        %v1142 = vadd.f32 %v1046, %v1141
        %v1143 = vpop.f32.mrf.mxu0
        %1144 = vmatprep.mubr.bf16.mxu0 0
        %1145 = vmatmul.mubr.bf16.gmra.mxu0 %v1028
        %v1146 = vpop.f32.mrf.mxu0
        %v1147 = vadd.f32 %v1046, %v1146
        %v1148 = vpop.f32.mrf.mxu0
        %v1149 = vpop.f32.mrf.mxu0
        %v1150 = vadd.f32 %v1046, %v1149
        %v1151 = vpop.f32.mrf.mxu0
        %1152 = vmatprep.mubr.bf16.mxu0 0
        %1153 = vmatmul.mubr.bf16.gmra.mxu0 %v1029
        %v1154 = vpop.f32.mrf.mxu0
        %v1155 = vadd.f32 %v1046, %v1154
        %v1156 = vpop.f32.mrf.mxu0
        %v1157 = vpop.f32.mrf.mxu0
        %v1158 = vadd.f32 %v1046, %v1157
        %v1159 = vpop.f32.mrf.mxu0
        %1160 = vmatprep.mubr.bf16.mxu0 0
        %1161 = vmatmul.mubr.bf16.gmra.mxu0 %v1030
        %v1162 = vpop.f32.mrf.mxu0
        %v1163 = vadd.f32 %v1046, %v1162
        %v1164 = vpop.f32.mrf.mxu0
        %v1165 = vpop.f32.mrf.mxu0
        %v1166 = vadd.f32 %v1046, %v1165
        %v1167 = vpop.f32.mrf.mxu0
        %1168 = vmatprep.mubr.bf16.mxu0 0
        %1169 = vmatmul.mubr.bf16.gmra.mxu0 %v1031
        %v1170 = vpop.f32.mrf.mxu0
        %v1171 = vadd.f32 %v1046, %v1170
        %v1172 = vpop.f32.mrf.mxu0
        %v1173 = vpop.f32.mrf.mxu0
        %v1174 = vadd.f32 %v1046, %v1173
        %v1175 = vpop.f32.mrf.mxu0
        %1176 = vmatprep.mubr.bf16.mxu0 0
        %1177 = vmatmul.mubr.bf16.gmra.mxu0 %v1032
        %v1178 = vpop.f32.mrf.mxu0
        %v1179 = vadd.f32 %v1046, %v1178
        %v1180 = vpop.f32.mrf.mxu0
        %v1181 = vpop.f32.mrf.mxu0
        %v1182 = vadd.f32 %v1046, %v1181
        %v1183 = vpop.f32.mrf.mxu0
        %1184 = vmatprep.mubr.bf16.mxu0 0
        %1185 = vmatmul.mubr.bf16.gmra.mxu0 %v1033
        %v1186 = vpop.f32.mrf.mxu0
        %v1187 = vadd.f32 %v1046, %v1186
        %v1188 = vpop.f32.mrf.mxu0
        %v1189 = vpop.f32.mrf.mxu0
        %v1190 = vadd.f32 %v1046, %v1189
        %v1191 = vpop.f32.mrf.mxu0
        %1192 = vmatprep.mubr.bf16.mxu0 0
        %1193 = vmatmul.mubr.bf16.gmra.mxu0 %v1034
        %v1194 = vpop.f32.mrf.mxu0
        %v1195 = vadd.f32 %v1046, %v1194
        %v1196 = vpop.f32.mrf.mxu0
        %v1197 = vpop.f32.mrf.mxu0
        %v1198 = vadd.f32 %v1046, %v1197
        %v1199 = vpop.f32.mrf.mxu0
        %1200 = vmatprep.mubr.bf16.mxu0 0
        %1201 = vmatmul.mubr.bf16.gmra.mxu0 %v1035
        %v1202 = vpop.f32.mrf.mxu0
        %v1203 = vadd.f32 %v1046, %v1202
        %v1204 = vpop.f32.mrf.mxu0
        %v1205 = vpop.f32.mrf.mxu0
        %v1206 = vadd.f32 %v1046, %v1205
        %v1207 = vpop.f32.mrf.mxu0
        %1208 = vmatprep.mubr.bf16.mxu0 0
        %1209 = vmatmul.mubr.bf16.gmra.mxu0 %v1036
        %v1210 = vpop.f32.mrf.mxu0
        %v1211 = vadd.f32 %v1046, %v1210
        %v1212 = vpop.f32.mrf.mxu0
        %v1213 = vpop.f32.mrf.mxu0
        %v1214 = vadd.f32 %v1046, %v1213
        %v1215 = vpop.f32.mrf.mxu0
        %1216 = vmatprep.mubr.bf16.mxu0 0
        %1217 = vmatmul.mubr.bf16.gmra.mxu0 %v1037
        %v1218 = vpop.f32.mrf.mxu0
        %v1219 = vadd.f32 %v1046, %v1218
        %v1220 = vpop.f32.mrf.mxu0
        %v1221 = vpop.f32.mrf.mxu0
        %v1222 = vadd.f32 %v1046, %v1221
        %v1223 = vpop.f32.mrf.mxu0
        %1224 = vmatprep.mubr.bf16.mxu0 0
        %1225 = vmatmul.mubr.bf16.gmra.mxu0 %v1038
        %v1226 = vpop.f32.mrf.mxu0
        %v1227 = vadd.f32 %v1046, %v1226
        %v1228 = vpop.f32.mrf.mxu0
        %v1229 = vpop.f32.mrf.mxu0
        %v1230 = vadd.f32 %v1046, %v1229
        %v1231 = vpop.f32.mrf.mxu0
        %1232 = vmatprep.mubr.bf16.mxu0 0
        %1233 = vmatmul.mubr.bf16.gmra.mxu0 %v1039
        %v1234 = vpop.f32.mrf.mxu0
        %v1235 = vadd.f32 %v1046, %v1234
        %v1236 = vpop.f32.mrf.mxu0
        %v1237 = vpop.f32.mrf.mxu0
        %v1238 = vadd.f32 %v1046, %v1237
        %v1239 = vpop.f32.mrf.mxu0
        %1240 = vmatprep.mubr.bf16.mxu0 0
        %1241 = vmatmul.mubr.bf16.gmra.mxu0 %v1040
        %v1242 = vpop.f32.mrf.mxu0
        %v1243 = vadd.f32 %v1046, %v1242
        %v1244 = vpop.f32.mrf.mxu0
        %v1245 = vpop.f32.mrf.mxu0
        %v1246 = vadd.f32 %v1046, %v1245
        %v1247 = vpop.f32.mrf.mxu0
        %1248 = vmatprep.mubr.bf16.mxu0 0
        %1249 = vmatmul.mubr.bf16.gmra.mxu0 %v1041
        %v1250 = vpop.f32.mrf.mxu0
        %v1251 = vadd.f32 %v1046, %v1250
        %v1252 = vpop.f32.mrf.mxu0
        %v1253 = vpop.f32.mrf.mxu0
        %v1254 = vadd.f32 %v1046, %v1253
        %v1255 = vpop.f32.mrf.mxu0
        %1256 = vdwg.mxu0
        %vm1257 = vcmp.ge.f32.partialorder %v1131, 0.0
        %vm1258 = vcmp.ge.f32.partialorder %v1134, 0.0
        %vm1259 = vcmp.ge.f32.partialorder %v1139, 0.0
        %vm1260 = vcmp.ge.f32.partialorder %v1142, 0.0
        %vm1261 = vcmp.ge.f32.partialorder %v1147, 0.0
        %vm1262 = vcmp.ge.f32.partialorder %v1150, 0.0
        %vm1263 = vcmp.ge.f32.partialorder %v1155, 0.0
        %vm1264 = vcmp.ge.f32.partialorder %v1158, 0.0
        %vm1265 = vcmp.ge.f32.partialorder %v1163, 0.0
        %vm1266 = vcmp.ge.f32.partialorder %v1166, 0.0
        %vm1267 = vcmp.ge.f32.partialorder %v1171, 0.0
        %vm1268 = vcmp.ge.f32.partialorder %v1174, 0.0
        %vm1269 = vcmp.ge.f32.partialorder %v1179, 0.0
        %vm1270 = vcmp.ge.f32.partialorder %v1182, 0.0
        %vm1271 = vcmp.ge.f32.partialorder %v1187, 0.0
        %vm1272 = vcmp.ge.f32.partialorder %v1190, 0.0
        %vm1273 = vcmp.ge.f32.partialorder %v1195, 0.0
        %vm1274 = vcmp.ge.f32.partialorder %v1198, 0.0
        %vm1275 = vcmp.ge.f32.partialorder %v1203, 0.0
        %vm1276 = vcmp.ge.f32.partialorder %v1206, 0.0
        %vm1277 = vcmp.ge.f32.partialorder %v1211, 0.0
        %vm1278 = vcmp.ge.f32.partialorder %v1214, 0.0
        %vm1279 = vcmp.ge.f32.partialorder %v1219, 0.0
        %vm1280 = vcmp.ge.f32.partialorder %v1222, 0.0
        %vm1281 = vcmp.ge.f32.partialorder %v1227, 0.0
        %vm1282 = vcmp.ge.f32.partialorder %v1230, 0.0
        %vm1283 = vcmp.ge.f32.partialorder %v1235, 0.0
        %vm1284 = vcmp.ge.f32.partialorder %v1238, 0.0
        %vm1285 = vcmp.ge.f32.partialorder %v1243, 0.0
        %vm1286 = vcmp.ge.f32.partialorder %v1246, 0.0
        %vm1287 = vcmp.ge.f32.partialorder %v1251, 0.0
        %vm1288 = vcmp.ge.f32.partialorder %v1254, 0.0
        %v1289 = vmul.f32 %v1131, 0.01
        %v1290 = vmul.f32 %v1134, 0.01
        %v1291 = vmul.f32 %v1139, 0.01
        %v1292 = vmul.f32 %v1142, 0.01
        %v1293 = vmul.f32 %v1147, 0.01
        %v1294 = vmul.f32 %v1150, 0.01
        %v1295 = vmul.f32 %v1155, 0.01
        %v1296 = vmul.f32 %v1158, 0.01
        %v1297 = vmul.f32 %v1163, 0.01
        %v1298 = vmul.f32 %v1166, 0.01
        %v1299 = vmul.f32 %v1171, 0.01
        %v1300 = vmul.f32 %v1174, 0.01
        %v1301 = vmul.f32 %v1179, 0.01
        %v1302 = vmul.f32 %v1182, 0.01
        %v1303 = vmul.f32 %v1187, 0.01
        %v1304 = vmul.f32 %v1190, 0.01
        %v1305 = vmul.f32 %v1195, 0.01
        %v1306 = vmul.f32 %v1198, 0.01
        %v1307 = vmul.f32 %v1203, 0.01
        %v1308 = vmul.f32 %v1206, 0.01
        %v1309 = vmul.f32 %v1211, 0.01
        %v1310 = vmul.f32 %v1214, 0.01
        %v1311 = vmul.f32 %v1219, 0.01
        %v1312 = vmul.f32 %v1222, 0.01
        %v1313 = vmul.f32 %v1227, 0.01
        %v1314 = vmul.f32 %v1230, 0.01
        %v1315 = vmul.f32 %v1235, 0.01
        %v1316 = vmul.f32 %v1238, 0.01
        %v1317 = vmul.f32 %v1243, 0.01
        %v1318 = vmul.f32 %v1246, 0.01
        %v1319 = vmul.f32 %v1251, 0.01
        %v1320 = vmul.f32 %v1254, 0.01
        %v1321 = vsel %vm1257, %v1131, %v1289
        %v1322 = vsel %vm1258, %v1134, %v1290
        %v1323 = vsel %vm1259, %v1139, %v1291
        %v1324 = vsel %vm1260, %v1142, %v1292
        %v1325 = vsel %vm1261, %v1147, %v1293
        %v1326 = vsel %vm1262, %v1150, %v1294
        %v1327 = vsel %vm1263, %v1155, %v1295
        %v1328 = vsel %vm1264, %v1158, %v1296
        %v1329 = vsel %vm1265, %v1163, %v1297
        %v1330 = vsel %vm1266, %v1166, %v1298
        %v1331 = vsel %vm1267, %v1171, %v1299
        %v1332 = vsel %vm1268, %v1174, %v1300
        %v1333 = vsel %vm1269, %v1179, %v1301
        %v1334 = vsel %vm1270, %v1182, %v1302
        %v1335 = vsel %vm1271, %v1187, %v1303
        %v1336 = vsel %vm1272, %v1190, %v1304
        %v1337 = vsel %vm1273, %v1195, %v1305
        %v1338 = vsel %vm1274, %v1198, %v1306
        %v1339 = vsel %vm1275, %v1203, %v1307
        %v1340 = vsel %vm1276, %v1206, %v1308
        %v1341 = vsel %vm1277, %v1211, %v1309
        %v1342 = vsel %vm1278, %v1214, %v1310
        %v1343 = vsel %vm1279, %v1219, %v1311
        %v1344 = vsel %vm1280, %v1222, %v1312
        %v1345 = vsel %vm1281, %v1227, %v1313
        %v1346 = vsel %vm1282, %v1230, %v1314
        %v1347 = vsel %vm1283, %v1235, %v1315
        %v1348 = vsel %vm1284, %v1238, %v1316
        %v1349 = vsel %vm1285, %v1243, %v1317
        %v1350 = vsel %vm1286, %v1246, %v1318
        %v1351 = vsel %vm1287, %v1251, %v1319
        %v1352 = vsel %vm1288, %v1254, %v1320
        %s1353 = scalar_lea.vmem [#allocation5], 192
        %v1354 = vld [vmem:[%s1353] sm:$0xf]
        %v1355 = vld [vmem:[%s1353 + $0x4] sm:$0xf]
        %v1356 = vld [vmem:[%s1353 + $0x8] sm:$0xf]
        %v1357 = vld [vmem:[%s1353 + $0xc] sm:$0xf]
        %v1358 = vld [vmem:[%s1353 + $0x10] sm:$0xf]
        %v1359 = vld [vmem:[%s1353 + $0x14] sm:$0xf]
        %v1360 = vld [vmem:[%s1353 + $0x18] sm:$0xf]
        %v1361 = vld [vmem:[%s1353 + $0x1c] sm:$0xf]
        %v1362 = vld [vmem:[%s1353 + $0x20] sm:$0xf]
        %v1363 = vld [vmem:[%s1353 + $0x24] sm:$0xf]
        %v1364 = vld [vmem:[%s1353 + $0x28] sm:$0xf]
        %v1365 = vld [vmem:[%s1353 + $0x2c] sm:$0xf]
        %v1366 = vld [vmem:[%s1353 + $0x30] sm:$0xf]
        %v1367 = vld [vmem:[%s1353 + $0x34] sm:$0xf]
        %v1368 = vld [vmem:[%s1353 + $0x38] sm:$0xf]
        %v1369 = vld [vmem:[%s1353 + $0x3c] sm:$0xf]
        %s1370 = scalar_lea.vmem [#allocation7], 3
        %v1371 = vld [vmem:[%s1370] sm:$0x1]
        %v1372 = vpack.c.bf16 %v1322, %v1321
        %v1373 = vpack.c.bf16 %v1324, %v1323
        %v1374 = vpack.c.bf16 %v1326, %v1325
        %v1375 = vpack.c.bf16 %v1328, %v1327
        %v1376 = vpack.c.bf16 %v1330, %v1329
        %v1377 = vpack.c.bf16 %v1332, %v1331
        %v1378 = vpack.c.bf16 %v1334, %v1333
        %v1379 = vpack.c.bf16 %v1336, %v1335
        %v1380 = vpack.c.bf16 %v1338, %v1337
        %v1381 = vpack.c.bf16 %v1340, %v1339
        %v1382 = vpack.c.bf16 %v1342, %v1341
        %v1383 = vpack.c.bf16 %v1344, %v1343
        %v1384 = vpack.c.bf16 %v1346, %v1345
        %v1385 = vpack.c.bf16 %v1348, %v1347
        %v1386 = vpack.c.bf16 %v1350, %v1349
        %v1387 = vpack.c.bf16 %v1352, %v1351
        %v1389 = vlaneseq
        %v1390 = vshrl.u32 %v1389, 7
        %v1391 = vsub.s32 0, %v1390
        %v1392 = vrot.slane %v1371, %v1391
        %v1410 = vunpack.c.l.b16 %v1354
        %v1411 = vunpack.c.l.b16 %v1355
        %v1412 = vunpack.c.l.b16 %v1356
        %v1413 = vunpack.c.l.b16 %v1357
        %v1414 = vunpack.c.l.b16 %v1358
        %v1415 = vunpack.c.l.b16 %v1359
        %v1416 = vunpack.c.l.b16 %v1360
        %v1417 = vunpack.c.l.b16 %v1361
        %v1418 = vunpack.c.l.b16 %v1362
        %v1419 = vunpack.c.l.b16 %v1363
        %v1420 = vunpack.c.l.b16 %v1364
        %v1421 = vunpack.c.l.b16 %v1365
        %v1422 = vunpack.c.l.b16 %v1366
        %v1423 = vunpack.c.l.b16 %v1367
        %v1424 = vunpack.c.l.b16 %v1368
        %v1425 = vunpack.c.l.b16 %v1369
        %v1426 = vpack.c.b16 %v1411, %v1410
        %v1427 = vpack.c.b16 %v1413, %v1412
        %v1428 = vpack.c.b16 %v1415, %v1414
        %v1429 = vpack.c.b16 %v1417, %v1416
        %v1430 = vpack.c.b16 %v1419, %v1418
        %v1431 = vpack.c.b16 %v1421, %v1420
        %v1432 = vpack.c.b16 %v1423, %v1422
        %v1433 = vpack.c.b16 %v1425, %v1424
        %1442 = vmatprep.subr.bf16.mxu0 0
        %1443 = vmatpush1.bf16.msra.mxu0 %v1433
        %1444 = vmatprep.subr.bf16.mxu0 0
        %1445 = vmatpush1.bf16.msra.mxu0 %v1432
        %1446 = vmatprep.subr.bf16.mxu0 0
        %1447 = vmatpush1.bf16.msra.mxu0 %v1431
        %1448 = vmatprep.subr.bf16.mxu0 0
        %1449 = vmatpush1.bf16.msra.mxu0 %v1430
        %1450 = vmatprep.subr.bf16.mxu0 0
        %1451 = vmatpush1.bf16.msra.mxu0 %v1429
        %1452 = vmatprep.subr.bf16.mxu0 0
        %1453 = vmatpush1.bf16.msra.mxu0 %v1428
        %1454 = vmatprep.subr.bf16.mxu0 0
        %1455 = vmatpush1.bf16.msra.mxu0 %v1427
        %1456 = vmatprep.subr.bf16.mxu0 0
        %1457 = vmatpush1.bf16.msra.mxu0 %v1426
        %1458 = vmatprep.subr.bf16.mxu0 0
        %1459 = vmatpush2.bf16.msra.mxu0 0
        %1460 = vmatprep.subr.bf16.mxu0 0
        %1461 = vmatpush2.bf16.msra.mxu0 0
        %1462 = vmatprep.subr.bf16.mxu0 0
        %1463 = vmatpush2.bf16.msra.mxu0 0
        %1464 = vmatprep.subr.bf16.mxu0 0
        %1465 = vmatpush2.bf16.msra.mxu0 0
        %1466 = vmatprep.subr.bf16.mxu0 0
        %1467 = vmatpush2.bf16.msra.mxu0 0
        %1468 = vmatprep.subr.bf16.mxu0 0
        %1469 = vmatpush2.bf16.msra.mxu0 0
        %1470 = vmatprep.subr.bf16.mxu0 0
        %1471 = vmatpush2.bf16.msra.mxu0 0
        %1472 = vmatprep.subr.bf16.mxu0 0
        %1473 = vmatpush2.bf16.msra.mxu0 0
        %1474 = vmatprep.mubr.bf16.mxu0 0
        %1475 = vmatmul.mubr.bf16.gmra.mxu0 %v1372
        %v1476 = vpop.f32.mrf.mxu0
        %v1477 = vadd.f32 %v1392, %v1476
        %v1478 = vpop.f32.mrf.mxu0
        %v1479 = vpop.f32.mrf.mxu0
        %v1480 = vadd.f32 %v1392, %v1479
        %v1481 = vpop.f32.mrf.mxu0
        %1482 = vmatprep.mubr.bf16.mxu0 0
        %1483 = vmatmul.mubr.bf16.gmra.mxu0 %v1373
        %v1484 = vpop.f32.mrf.mxu0
        %v1485 = vadd.f32 %v1392, %v1484
        %v1486 = vpop.f32.mrf.mxu0
        %v1487 = vpop.f32.mrf.mxu0
        %v1488 = vadd.f32 %v1392, %v1487
        %v1489 = vpop.f32.mrf.mxu0
        %1490 = vmatprep.mubr.bf16.mxu0 0
        %1491 = vmatmul.mubr.bf16.gmra.mxu0 %v1374
        %v1492 = vpop.f32.mrf.mxu0
        %v1493 = vadd.f32 %v1392, %v1492
        %v1494 = vpop.f32.mrf.mxu0
        %v1495 = vpop.f32.mrf.mxu0
        %v1496 = vadd.f32 %v1392, %v1495
        %v1497 = vpop.f32.mrf.mxu0
        %1498 = vmatprep.mubr.bf16.mxu0 0
        %1499 = vmatmul.mubr.bf16.gmra.mxu0 %v1375
        %v1500 = vpop.f32.mrf.mxu0
        %v1501 = vadd.f32 %v1392, %v1500
        %v1502 = vpop.f32.mrf.mxu0
        %v1503 = vpop.f32.mrf.mxu0
        %v1504 = vadd.f32 %v1392, %v1503
        %v1505 = vpop.f32.mrf.mxu0
        %1506 = vmatprep.mubr.bf16.mxu0 0
        %1507 = vmatmul.mubr.bf16.gmra.mxu0 %v1376
        %v1508 = vpop.f32.mrf.mxu0
        %v1509 = vadd.f32 %v1392, %v1508
        %v1510 = vpop.f32.mrf.mxu0
        %v1511 = vpop.f32.mrf.mxu0
        %v1512 = vadd.f32 %v1392, %v1511
        %v1513 = vpop.f32.mrf.mxu0
        %1514 = vmatprep.mubr.bf16.mxu0 0
        %1515 = vmatmul.mubr.bf16.gmra.mxu0 %v1377
        %v1516 = vpop.f32.mrf.mxu0
        %v1517 = vadd.f32 %v1392, %v1516
        %v1518 = vpop.f32.mrf.mxu0
        %v1519 = vpop.f32.mrf.mxu0
        %v1520 = vadd.f32 %v1392, %v1519
        %v1521 = vpop.f32.mrf.mxu0
        %1522 = vmatprep.mubr.bf16.mxu0 0
        %1523 = vmatmul.mubr.bf16.gmra.mxu0 %v1378
        %v1524 = vpop.f32.mrf.mxu0
        %v1525 = vadd.f32 %v1392, %v1524
        %v1526 = vpop.f32.mrf.mxu0
        %v1527 = vpop.f32.mrf.mxu0
        %v1528 = vadd.f32 %v1392, %v1527
        %v1529 = vpop.f32.mrf.mxu0
        %1530 = vmatprep.mubr.bf16.mxu0 0
        %1531 = vmatmul.mubr.bf16.gmra.mxu0 %v1379
        %v1532 = vpop.f32.mrf.mxu0
        %v1533 = vadd.f32 %v1392, %v1532
        %v1534 = vpop.f32.mrf.mxu0
        %v1535 = vpop.f32.mrf.mxu0
        %v1536 = vadd.f32 %v1392, %v1535
        %v1537 = vpop.f32.mrf.mxu0
        %1538 = vmatprep.mubr.bf16.mxu0 0
        %1539 = vmatmul.mubr.bf16.gmra.mxu0 %v1380
        %v1540 = vpop.f32.mrf.mxu0
        %v1541 = vadd.f32 %v1392, %v1540
        %v1542 = vpop.f32.mrf.mxu0
        %v1543 = vpop.f32.mrf.mxu0
        %v1544 = vadd.f32 %v1392, %v1543
        %v1545 = vpop.f32.mrf.mxu0
        %1546 = vmatprep.mubr.bf16.mxu0 0
        %1547 = vmatmul.mubr.bf16.gmra.mxu0 %v1381
        %v1548 = vpop.f32.mrf.mxu0
        %v1549 = vadd.f32 %v1392, %v1548
        %v1550 = vpop.f32.mrf.mxu0
        %v1551 = vpop.f32.mrf.mxu0
        %v1552 = vadd.f32 %v1392, %v1551
        %v1553 = vpop.f32.mrf.mxu0
        %1554 = vmatprep.mubr.bf16.mxu0 0
        %1555 = vmatmul.mubr.bf16.gmra.mxu0 %v1382
        %v1556 = vpop.f32.mrf.mxu0
        %v1557 = vadd.f32 %v1392, %v1556
        %v1558 = vpop.f32.mrf.mxu0
        %v1559 = vpop.f32.mrf.mxu0
        %v1560 = vadd.f32 %v1392, %v1559
        %v1561 = vpop.f32.mrf.mxu0
        %1562 = vmatprep.mubr.bf16.mxu0 0
        %1563 = vmatmul.mubr.bf16.gmra.mxu0 %v1383
        %v1564 = vpop.f32.mrf.mxu0
        %v1565 = vadd.f32 %v1392, %v1564
        %v1566 = vpop.f32.mrf.mxu0
        %v1567 = vpop.f32.mrf.mxu0
        %v1568 = vadd.f32 %v1392, %v1567
        %v1569 = vpop.f32.mrf.mxu0
        %1570 = vmatprep.mubr.bf16.mxu0 0
        %1571 = vmatmul.mubr.bf16.gmra.mxu0 %v1384
        %v1572 = vpop.f32.mrf.mxu0
        %v1573 = vadd.f32 %v1392, %v1572
        %v1574 = vpop.f32.mrf.mxu0
        %v1575 = vpop.f32.mrf.mxu0
        %v1576 = vadd.f32 %v1392, %v1575
        %v1577 = vpop.f32.mrf.mxu0
        %1578 = vmatprep.mubr.bf16.mxu0 0
        %1579 = vmatmul.mubr.bf16.gmra.mxu0 %v1385
        %v1580 = vpop.f32.mrf.mxu0
        %v1581 = vadd.f32 %v1392, %v1580
        %v1582 = vpop.f32.mrf.mxu0
        %v1583 = vpop.f32.mrf.mxu0
        %v1584 = vadd.f32 %v1392, %v1583
        %v1585 = vpop.f32.mrf.mxu0
        %1586 = vmatprep.mubr.bf16.mxu0 0
        %1587 = vmatmul.mubr.bf16.gmra.mxu0 %v1386
        %v1588 = vpop.f32.mrf.mxu0
        %v1589 = vadd.f32 %v1392, %v1588
        %v1590 = vpop.f32.mrf.mxu0
        %v1591 = vpop.f32.mrf.mxu0
        %v1592 = vadd.f32 %v1392, %v1591
        %v1593 = vpop.f32.mrf.mxu0
        %1594 = vmatprep.mubr.bf16.mxu0 0
        %1595 = vmatmul.mubr.bf16.gmra.mxu0 %v1387
        %v1596 = vpop.f32.mrf.mxu0
        %v1597 = vadd.f32 %v1392, %v1596
        %v1598 = vpop.f32.mrf.mxu0
        %v1599 = vpop.f32.mrf.mxu0
        %v1600 = vadd.f32 %v1392, %v1599
        %v1601 = vpop.f32.mrf.mxu0
        %1602 = vdwg.mxu0
        %1603 = vst [vmem:[%s217] sm:$0xff] %v1477
        %1604 = vst [vmem:[%s217 + $0x8] sm:$0xff] %v1480
        %1605 = vst [vmem:[%s217 + $0x10] sm:$0xff] %v1485
        %1606 = vst [vmem:[%s217 + $0x18] sm:$0xff] %v1488
        %1607 = vst [vmem:[%s217 + $0x20] sm:$0xff] %v1493
        %1608 = vst [vmem:[%s217 + $0x28] sm:$0xff] %v1496
        %1609 = vst [vmem:[%s217 + $0x30] sm:$0xff] %v1501
        %1610 = vst [vmem:[%s217 + $0x38] sm:$0xff] %v1504
        %1611 = vst [vmem:[%s217 + $0x40] sm:$0xff] %v1509
        %1612 = vst [vmem:[%s217 + $0x48] sm:$0xff] %v1512
        %1613 = vst [vmem:[%s217 + $0x50] sm:$0xff] %v1517
        %1614 = vst [vmem:[%s217 + $0x58] sm:$0xff] %v1520
        %1615 = vst [vmem:[%s217 + $0x60] sm:$0xff] %v1525
        %1616 = vst [vmem:[%s217 + $0x68] sm:$0xff] %v1528
        %1617 = vst [vmem:[%s217 + $0x70] sm:$0xff] %v1533
        %1618 = vst [vmem:[%s217 + $0x78] sm:$0xff] %v1536
        %1619 = vst [vmem:[%s217 + $0x80] sm:$0xff] %v1541
        %1620 = vst [vmem:[%s217 + $0x88] sm:$0xff] %v1544
        %1621 = vst [vmem:[%s217 + $0x90] sm:$0xff] %v1549
        %1622 = vst [vmem:[%s217 + $0x98] sm:$0xff] %v1552
        %1623 = vst [vmem:[%s217 + $0xa0] sm:$0xff] %v1557
        %1624 = vst [vmem:[%s217 + $0xa8] sm:$0xff] %v1560
        %1625 = vst [vmem:[%s217 + $0xb0] sm:$0xff] %v1565
        %1626 = vst [vmem:[%s217 + $0xb8] sm:$0xff] %v1568
        %1627 = vst [vmem:[%s217 + $0xc0] sm:$0xff] %v1573
        %1628 = vst [vmem:[%s217 + $0xc8] sm:$0xff] %v1576
        %1629 = vst [vmem:[%s217 + $0xd0] sm:$0xff] %v1581
        %1630 = vst [vmem:[%s217 + $0xd8] sm:$0xff] %v1584
        %1631 = vst [vmem:[%s217 + $0xe0] sm:$0xff] %v1589
        %1632 = vst [vmem:[%s217 + $0xe8] sm:$0xff] %v1592
        %1633 = vst [vmem:[%s217 + $0xf0] sm:$0xff] %v1597
        %1634 = vst [vmem:[%s217 + $0xf8] sm:$0xff] %v1600
        %s1635 = sand.u32 %s97, 1
        %s1636 = scalar_lea.sflag [#allocation4], %s1635
        %s1637 = sand.u32 %s97, 1
        %s1638 = smul.addr %s1637, 256
        %s1639 = scalar_lea.vmem [#allocation8], %s1638
        // Predicated region
        $region45: #{tpu_custom_call.1} parent=31 // pred_check
          %p1640 = pneg %p107
        $region46: #{tpu_custom_call.1} parent=31 // pred_check_branch
          %1642 = sbr.rel (%p1640) target = $region48
        $region47: #{tpu_custom_call.1} parent=31 // pred_region
          %s1643 = smul.u32 32, %s21
          %s1645 = ssub.s32 4096, 4096
          %1646 = vsyncadd %s1636, %s1645
          %s1647 = smul.addr %s1643, 128
          %s1648 = scalar_lea.hbm %s3, %s1647
          %s1649 = sshll.u32 %s1639, 4
          %s1650 = int_to_ptr.vmem [resolvable:$true] %s1649
          %1655 = dma.vmem_to_hbm [thread:$0]  %s1650, 4096, %s1648, %s1636, 128, 128, 8
        $region48: #{tpu_custom_call.1} parent=31 // pred_fallthru
          _
      $region32: #{tpu_custom_call.1} parent=5 // pred_fallthru
        _
      %p1656 = scmp.le.s32.totalorder 2, %s16
      // Predicated region
      $region49: #{tpu_custom_call.1} parent=5 // pred_check
        %p1657 = pneg %p1656
      $region50: #{tpu_custom_call.1} parent=5 // pred_check_branch
        %1659 = sbr.rel (%p1657) target = $region52
      $region51: #{tpu_custom_call.1} parent=5 // pred_region
        %s1660 = ssub.s32 %s16, 2
        // Predicated region
        $region53: #{tpu_custom_call.1} parent=51 // pred_check
          %p1661 = pneg %p113
        $region54: #{tpu_custom_call.1} parent=51 // pred_check_branch
          %1663 = sbr.rel (%p1661) target = $region56
        $region55: #{tpu_custom_call.1} parent=51 // pred_region
          %s1664 = sand.u32 %s98, 1
          %s1665 = scalar_lea.sflag [#allocation4], %s1664
          %s1666 = sand.u32 %s98, 1
          %s1667 = smul.addr %s1666, 256
          %s1668 = scalar_lea.vmem [#allocation8], %s1667
          %1669 = dma.done %s1665, 4096
        $region56: #{tpu_custom_call.1} parent=51 // pred_fallthru
          _
      $region52: #{tpu_custom_call.1} parent=5 // pred_fallthru
        _
    $region6: #{tpu_custom_call.1} parent=1 // loop_footer
      %s20 = sadd.s32 1, %s16
    $region7: #{tpu_custom_call.1} parent=1 // loop_footer_branch
      %15 = sbr.rel target = $region3
    $region8: #{tpu_custom_call.1} parent=1 // loop_exit
      _
    %1670 = vsyncpa [#allocation3], 1
    %s1671 = scalar_lea.sflag [#allocation3], 1
    %1672 = vsyncpa %s1671, 1
    %1673 = vsyncpa [#allocation6], 1
    %1674 = vsyncpa [#allocation4], 1
    %s1675 = scalar_lea.sflag [#allocation4], 1
    %1676 = vsyncpa %s1675, 1

</llo_original>
